<compile_context>
chip_gen: v5e
topology: v5e:2x2
jax: 0.10.0
libtpu: 0.0.40
codegen_flags: <defaults>
</compile_context>

<pallas_src>
import jax
import jax.numpy as jnp
from jax.experimental import pallas as pl
from jax.experimental.pallas import tpu as pltpu

EPS = 1e-5
K_RAW = 784          # 28*28 flattened MNIST
H1 = 256
H2 = 64
OUT_W = 128          # fused lane-dense output: domain in lanes 0..1, class in 64..73

# lane-aligned segment offsets inside the coalesced aux block (all multiples of 128)
G2_OFF = 256
GD_OFF = 384
BIAS_OFF = 512
AUX_W = 640


def _mxu_has_int8():
    """int8 is native on the v5/v6 MXUs; v7x has no integer MXU path (fp8 only)."""
    try:
        kind = jax.devices()[0].device_kind.lower()
    except Exception:
        return False
    return ("v5" in kind) or ("v6" in kind)


def _bn_relu(h, gamma, beta, inv_b, col_scale=None):
    """Training-mode BatchNorm1d + ReLU, single-pass stats, f32 math.

    If `col_scale` is given, `h` is a per-column-scaled version of the true
    pre-BN activation (true = h * col_scale, e.g. from an int8 weight matmul);
    the scale is folded exactly into the BN affine, so no extra per-element
    dequant work is needed.  Pre-BN linear biases are assumed to have been
    dropped by the caller (exact under batch-mean subtraction).
    """
    mean = jnp.sum(h, axis=0, keepdims=True) * inv_b
    ex2 = jnp.sum(h * h, axis=0, keepdims=True) * inv_b
    var = jnp.maximum(ex2 - mean * mean, 0.0)      # clamp f32 cancellation
    if col_scale is None:
        scale = gamma * jax.lax.rsqrt(var + EPS)               # rsqrt -> EUP slot
    else:
        scale = gamma * jax.lax.rsqrt(var * (col_scale * col_scale) + EPS) * col_scale
    shift = beta - mean * scale
    return jnp.maximum(h * scale + shift, 0.0)


def dann_kernel(x_ref, w1_ref, w2_ref, wh_ref, wd2_ref, aux_ref, out_ref):
    inv_b = 1.0 / x_ref.shape[0]

    # coalesced small params: static, lane-aligned slices (no XLU rotates).
    aux = aux_ref[...]                                   # (3, 640) f32
    g1, be1 = aux[0:1, 0:H1], aux[1:2, 0:H1]
    g2, be2 = aux[0:1, G2_OFF:G2_OFF + H2], aux[1:2, G2_OFF:G2_OFF + H2]
    gd, bed = aux[0:1, GD_OFF:GD_OFF + H2], aux[1:2, GD_OFF:GD_OFF + H2]
    bias = aux[0:1, BIAS_OFF:BIAS_OFF + OUT_W]           # bd2 in 0..1, bc in 64..73

    # ---- feature trunk: Linear(784,256) -> BN -> ReLU -> Linear(256,64) -> BN -> ReLU
    x = x_ref[...].astype(jnp.bfloat16)                  # in-kernel cast (no HBM copy)
    w1 = w1_ref[...]
    if w1.dtype != jnp.bfloat16:                         # int8 weights (v5/v6 path)
        w1 = w1.astype(jnp.float32).astype(jnp.bfloat16)
        s1 = aux[2:3, 0:H1]                              # per-column dequant scale
    else:
        s1 = None
    h1 = jnp.dot(x, w1, preferred_element_type=jnp.float32)
    h1 = _bn_relu(h1, g1, be1, inv_b, col_scale=s1)                    # (B, 256) f32
    h2 = jnp.dot(h1.astype(jnp.bfloat16), w2_ref[...],
                 preferred_element_type=jnp.float32)
    feat = _bn_relu(h2, g2, be2, inv_b)                                # (B, 64) f32

    # ---- fused heads: wh = [wd1 | pad(wc)] -> one 128-wide matmul from feat.
    # ReverseLayerF.forward is identity, so the domain head consumes `feat` directly.
    head = jnp.dot(feat.astype(jnp.bfloat16), wh_ref[...],
                   preferred_element_type=jnp.float32)                 # (B, 128)
    d1 = _bn_relu(head[:, :H2], gd, bed, inv_b)                        # (B, 64)
    dom = jnp.dot(d1.astype(jnp.bfloat16), wd2_ref[...],
                  preferred_element_type=jnp.float32)                  # (B, 128), lanes 0..1 valid

    # Lane-iota select (single VPU op) instead of concatenate (XLU rotate):
    # class logits stay in lanes 64..73, domain logits land in lanes 0..1.
    lane = jax.lax.broadcasted_iota(jnp.int32, head.shape, 1)
    out_ref[...] = jnp.where(lane < H2, dom, head) + bias


def init_params(key):
    """Parameters in the original module's layout (Linear weights stored as (in, out))."""
    ks = jax.random.split(key, 16)
    p = {}

    def lin(kw, kb, fin, fout):
        w = jax.random.normal(kw, (fin, fout), jnp.float32) * (1.0 / jnp.sqrt(fin))
        b = jax.random.normal(kb, (1, fout), jnp.float32) * 0.01
        return w, b

    p["w1"], p["b1"] = lin(ks[0], ks[1], K_RAW, H1)
    p["g1"] = 1.0 + 0.01 * jax.random.normal(ks[2], (1, H1), jnp.float32)
    p["be1"] = 0.01 * jax.random.normal(ks[3], (1, H1), jnp.float32)
    p["w2"], p["b2"] = lin(ks[4], ks[5], H1, H2)
    p["g2"] = 1.0 + 0.01 * jax.random.normal(ks[6], (1, H2), jnp.float32)
    p["be2"] = 0.01 * jax.random.normal(ks[7], (1, H2), jnp.float32)
    p["wc"], p["bc"] = lin(ks[8], ks[9], H2, 10)
    p["wd1"], p["bd1"] = lin(ks[10], ks[11], H2, H2)
    p["gd"] = 1.0 + 0.01 * jax.random.normal(ks[12], (1, H2), jnp.float32)
    p["bed"] = 0.01 * jax.random.normal(ks[13], (1, H2), jnp.float32)
    p["wd2"], p["bd2"] = lin(ks[14], ks[15], H2, 2)
    return p


def pack_params(p, quantize_w1=None):
    """One-time repack into the kernel's fused layout.

    NOTE: drops the pre-BN linear biases (b1, b2, bd1) -- exact only for
    training-mode BatchNorm with batch statistics.  Do not reuse this packing
    with eval-mode (running-stats) BN.
    """
    f32 = jnp.float32
    if quantize_w1 is None:
        quantize_w1 = _mxu_has_int8()

    # fused head weight (64, 128): cols 0..63 = wd1, cols 64..73 = wc, rest zero
    wh = jnp.zeros((H2, OUT_W), f32)
    wh = wh.at[:, :H2].set(p["wd1"]).at[:, H2:H2 + 10].set(p["wc"])
    # final domain weight padded to 128 output lanes (cols 0..1 valid)
    wd2 = jnp.zeros((H2, OUT_W), f32).at[:, :2].set(p["wd2"])

    # coalesced aux block (3, 640): gamma/beta for the 3 BN layers, fused output
    # bias, and the w1 dequant scale -- all on 128-lane-aligned offsets.
    aux = jnp.zeros((3, AUX_W), f32)
    aux = aux.at[0, 0:H1].set(p["g1"][0]).at[1, 0:H1].set(p["be1"][0])
    aux = aux.at[0, G2_OFF:G2_OFF + H2].set(p["g2"][0]).at[1, G2_OFF:G2_OFF + H2].set(p["be2"][0])
    aux = aux.at[0, GD_OFF:GD_OFF + H2].set(p["gd"][0]).at[1, GD_OFF:GD_OFF + H2].set(p["bed"][0])
    aux = aux.at[0, BIAS_OFF:BIAS_OFF + 2].set(p["bd2"][0])             # domain bias (lanes 0..1)
    aux = aux.at[0, BIAS_OFF + H2:BIAS_OFF + H2 + 10].set(p["bc"][0])   # class bias (lanes 64..73)

    if quantize_w1:
        # per-output-column symmetric int8; scale folded exactly into BN-1.
        s = jnp.maximum(jnp.max(jnp.abs(p["w1"]), axis=0, keepdims=True) / 127.0, 1e-12)
        w1 = jnp.clip(jnp.round(p["w1"] / s), -127.0, 127.0).astype(jnp.int8)
        aux = aux.at[2, 0:H1].set(s[0])
    else:
        w1 = p["w1"].astype(jnp.bfloat16)

    return {
        "w1": w1,                               # (784, 256) int8 (v5/v6) or bf16
        "w2": p["w2"].astype(jnp.bfloat16),     # (256, 64)
        "wh": wh.astype(jnp.bfloat16),          # (64, 128)
        "wd2": wd2.astype(jnp.bfloat16),        # (64, 128)
        "aux": aux,                             # (3, 640) f32
        "quantized": bool(quantize_w1),
    }


def dann_forward(input_data, alpha, packed):
    # alpha only affects the backward pass (gradient reversal); forward is identity.
    del alpha
    B = input_data.shape[0]
    # nn.Flatten is a metadata-only reshape; the f32->bf16 cast happens inside
    # the kernel, so no padded/cast copy of x is written back to HBM.
    x = input_data.reshape(B, K_RAW)

    args = (x, packed["w1"], packed["w2"], packed["wh"], packed["wd2"], packed["aux"])

    flops = 2 * B * (K_RAW * H1 + H1 * H2 + H2 * OUT_W + H2 * OUT_W)
    bytes_accessed = sum(int(a.size) * a.dtype.itemsize for a in args) + B * OUT_W * 4

    vmem = pl.BlockSpec(memory_space=pltpu.MemorySpace.VMEM)
    # Single-block call (~1-2 MiB footprint) -- fits the default scoped VMEM
    # limit on every generation, so no vmem_limit_bytes request is made.
    # Larger per-call batches amortize the weight DMA and fill the 256-wide
    # MXU on v6e/v7x; the whole batch must stay one block for exact BN stats.
    out = pl.pallas_call(
        dann_kernel,
        out_shape=jax.ShapeDtypeStruct((B, OUT_W), jnp.float32),
        in_specs=[vmem] * len(args),
        out_specs=vmem,
        cost_estimate=pl.CostEstimate(flops=flops,
                                      transcendentals=H1 + 2 * H2,
                                      bytes_accessed=bytes_accessed),
    )(*args)
    return out[:, H2:H2 + 10], out[:, :2]


def dann_reference(input_data, alpha, params):
    """Faithful module reference (pre-BN biases kept, two-pass BN stats, original
    unquantized weights); matmul operands cast to bf16 to mirror the MXU dtype."""
    del alpha
    B = input_data.shape[0]
    x = input_data.reshape(B, -1).astype(jnp.float32)

    def mm(a, w):
        return jnp.dot(a.astype(jnp.bfloat16), w.astype(jnp.bfloat16),
                       preferred_element_type=jnp.float32)

    def bn_relu(h, g, b):
        m = jnp.mean(h, axis=0, keepdims=True)
        v = jnp.mean((h - m) ** 2, axis=0, keepdims=True)
        return jnp.maximum((h - m) / jnp.sqrt(v + EPS) * g + b, 0.0)

    h1 = bn_relu(mm(x, params["w1"]) + params["b1"], params["g1"], params["be1"])
    feat = bn_relu(mm(h1, params["w2"]) + params["b2"], params["g2"], params["be2"])
    cls = mm(feat, params["wc"]) + params["bc"]
    d1 = bn_relu(mm(feat, params["wd1"]) + params["bd1"], params["gd"], params["bed"])
    dom = mm(d1, params["wd2"]) + params["bd2"]
    return cls, dom


if __name__ == "__main__":
    key = jax.random.PRNGKey(0)
    k_x, k_p = jax.random.split(key)

    B = 128  # MNIST-style batch; whole batch is one block so BN stats are exact
    input_data = jax.random.normal(k_x, (B, 1, 28, 28), jnp.float32)  # NCHW
    alpha = jnp.float32(0.5)

    params = init_params(k_p)
    packed = pack_params(params)

    class_out, domain_out = dann_forward(input_data, alpha, packed)
    class_out, domain_out = jax.block_until_ready((class_out, domain_out))

    ref_cls, ref_dom = dann_reference(input_data, alpha, params)
    assert class_out.shape == (B, 10) and domain_out.shape == (B, 2)
    # quantization-aware tolerance: int8 w1 (v5/v6) adds ~1e-2-level error on
    # top of the shared bf16 MXU rounding; bf16 path keeps the tighter bound.
    tol = 8e-2 if packed["quantized"] else 2e-2
    assert jnp.allclose(class_out, ref_cls, atol=tol, rtol=tol)
    assert jnp.allclose(domain_out, ref_dom, atol=tol, rtol=tol)

    print("KERNEL_OK")
</pallas_src>

<mosaic_0001>
module attributes {stable_mosaic.version = 11 : i64} {
  func.func @dann_kernel(%arg0: memref<128x784xf32, #tpu.memory_space<vmem>>, %arg1: memref<784x256xbf16, #tpu.memory_space<vmem>>, %arg2: memref<256x64xbf16, #tpu.memory_space<vmem>>, %arg3: memref<64x128xbf16, #tpu.memory_space<vmem>>, %arg4: memref<64x128xbf16, #tpu.memory_space<vmem>>, %arg5: memref<3x640xf32, #tpu.memory_space<vmem>>, %arg6: memref<128x128xf32, #tpu.memory_space<vmem>>) attributes {dimension_semantics = [], scalar_prefetch = 0 : i64, scratch_operands = 0 : i64, tpu.core_type = #tpu.core_type<tc>} {
    %c0 = arith.constant 0 : index
    %c0_0 = arith.constant 0 : index
    %0 = vector.load %arg5[%c0, %c0_0] : memref<3x640xf32, #tpu.memory_space<vmem>>, vector<3x640xf32>
    %1 = vector.extract_strided_slice %0 {offsets = [0, 0], sizes = [1, 256], strides = [1, 1]} : vector<3x640xf32> to vector<1x256xf32>
    %2 = vector.extract_strided_slice %0 {offsets = [1, 0], sizes = [1, 256], strides = [1, 1]} : vector<3x640xf32> to vector<1x256xf32>
    %3 = vector.extract_strided_slice %0 {offsets = [0, 256], sizes = [1, 64], strides = [1, 1]} : vector<3x640xf32> to vector<1x64xf32>
    %4 = vector.extract_strided_slice %0 {offsets = [1, 256], sizes = [1, 64], strides = [1, 1]} : vector<3x640xf32> to vector<1x64xf32>
    %5 = vector.extract_strided_slice %0 {offsets = [0, 384], sizes = [1, 64], strides = [1, 1]} : vector<3x640xf32> to vector<1x64xf32>
    %6 = vector.extract_strided_slice %0 {offsets = [1, 384], sizes = [1, 64], strides = [1, 1]} : vector<3x640xf32> to vector<1x64xf32>
    %7 = vector.extract_strided_slice %0 {offsets = [0, 512], sizes = [1, 128], strides = [1, 1]} : vector<3x640xf32> to vector<1x128xf32>
    %c0_1 = arith.constant 0 : index
    %c0_2 = arith.constant 0 : index
    %8 = vector.load %arg0[%c0_1, %c0_2] : memref<128x784xf32, #tpu.memory_space<vmem>>, vector<128x784xf32>
    %9 = arith.truncf %8 : vector<128x784xf32> to vector<128x784xbf16>
    %c0_3 = arith.constant 0 : index
    %c0_4 = arith.constant 0 : index
    %10 = vector.load %arg1[%c0_3, %c0_4] : memref<784x256xbf16, #tpu.memory_space<vmem>>, vector<784x256xbf16>
    %cst = arith.constant dense<0.000000e+00> : vector<128x256xf32>
    %11 = tpu.matmul %9, %10, %cst {dimension_numbers = #tpu.dot_dimension_numbers<[1], [0], [0], [1], [0, 0, 1, 1], [], []>} : vector<128x784xbf16>, vector<784x256xbf16>, vector<128x256xf32> -> vector<128x256xf32>
    %cst_5 = arith.constant dense<0.000000e+00> : vector<256xf32>
    %12 = vector.multi_reduction <add>, %11, %cst_5 [0] : vector<128x256xf32> to vector<256xf32>
    %13 = vector.shape_cast %12 : vector<256xf32> to vector<1x256xf32>
    %cst_6 = arith.constant 7.812500e-03 : f32
    %14 = vector.broadcast %cst_6 : f32 to vector<1x256xf32>
    %15 = arith.mulf %13, %14 : vector<1x256xf32>
    %16 = arith.mulf %11, %11 : vector<128x256xf32>
    %cst_7 = arith.constant dense<0.000000e+00> : vector<256xf32>
    %17 = vector.multi_reduction <add>, %16, %cst_7 [0] : vector<128x256xf32> to vector<256xf32>
    %18 = vector.shape_cast %17 : vector<256xf32> to vector<1x256xf32>
    %cst_8 = arith.constant 7.812500e-03 : f32
    %19 = vector.broadcast %cst_8 : f32 to vector<1x256xf32>
    %20 = arith.mulf %18, %19 : vector<1x256xf32>
    %21 = arith.mulf %15, %15 : vector<1x256xf32>
    %22 = arith.subf %20, %21 : vector<1x256xf32>
    %cst_9 = arith.constant 0.000000e+00 : f32
    %23 = vector.broadcast %cst_9 : f32 to vector<1x256xf32>
    %24 = arith.maximumf %22, %23 : vector<1x256xf32>
    %cst_10 = arith.constant 9.99999974E-6 : f32
    %25 = vector.broadcast %cst_10 : f32 to vector<1x256xf32>
    %26 = arith.addf %24, %25 : vector<1x256xf32>
    %27 = math.rsqrt %26 : vector<1x256xf32>
    %28 = arith.mulf %1, %27 : vector<1x256xf32>
    %29 = arith.mulf %15, %28 : vector<1x256xf32>
    %30 = arith.subf %2, %29 : vector<1x256xf32>
    %31 = vector.broadcast %28 : vector<1x256xf32> to vector<128x256xf32>
    %32 = arith.mulf %11, %31 : vector<128x256xf32>
    %33 = vector.broadcast %30 : vector<1x256xf32> to vector<128x256xf32>
    %34 = arith.addf %32, %33 : vector<128x256xf32>
    %cst_11 = arith.constant 0.000000e+00 : f32
    %35 = vector.broadcast %cst_11 : f32 to vector<128x256xf32>
    %36 = arith.maximumf %34, %35 : vector<128x256xf32>
    %37 = arith.truncf %36 : vector<128x256xf32> to vector<128x256xbf16>
    %c0_12 = arith.constant 0 : index
    %c0_13 = arith.constant 0 : index
    %38 = vector.load %arg2[%c0_12, %c0_13] : memref<256x64xbf16, #tpu.memory_space<vmem>>, vector<256x64xbf16>
    %cst_14 = arith.constant dense<0.000000e+00> : vector<128x64xf32>
    %39 = tpu.matmul %37, %38, %cst_14 {dimension_numbers = #tpu.dot_dimension_numbers<[1], [0], [0], [1], [0, 0, 1, 1], [], []>} : vector<128x256xbf16>, vector<256x64xbf16>, vector<128x64xf32> -> vector<128x64xf32>
    %cst_15 = arith.constant dense<0.000000e+00> : vector<64xf32>
    %40 = vector.multi_reduction <add>, %39, %cst_15 [0] : vector<128x64xf32> to vector<64xf32>
    %41 = vector.shape_cast %40 : vector<64xf32> to vector<1x64xf32>
    %cst_16 = arith.constant 7.812500e-03 : f32
    %42 = vector.broadcast %cst_16 : f32 to vector<1x64xf32>
    %43 = arith.mulf %41, %42 : vector<1x64xf32>
    %44 = arith.mulf %39, %39 : vector<128x64xf32>
    %cst_17 = arith.constant dense<0.000000e+00> : vector<64xf32>
    %45 = vector.multi_reduction <add>, %44, %cst_17 [0] : vector<128x64xf32> to vector<64xf32>
    %46 = vector.shape_cast %45 : vector<64xf32> to vector<1x64xf32>
    %cst_18 = arith.constant 7.812500e-03 : f32
    %47 = vector.broadcast %cst_18 : f32 to vector<1x64xf32>
    %48 = arith.mulf %46, %47 : vector<1x64xf32>
    %49 = arith.mulf %43, %43 : vector<1x64xf32>
    %50 = arith.subf %48, %49 : vector<1x64xf32>
    %cst_19 = arith.constant 0.000000e+00 : f32
    %51 = vector.broadcast %cst_19 : f32 to vector<1x64xf32>
    %52 = arith.maximumf %50, %51 : vector<1x64xf32>
    %cst_20 = arith.constant 9.99999974E-6 : f32
    %53 = vector.broadcast %cst_20 : f32 to vector<1x64xf32>
    %54 = arith.addf %52, %53 : vector<1x64xf32>
    %55 = math.rsqrt %54 : vector<1x64xf32>
    %56 = arith.mulf %3, %55 : vector<1x64xf32>
    %57 = arith.mulf %43, %56 : vector<1x64xf32>
    %58 = arith.subf %4, %57 : vector<1x64xf32>
    %59 = vector.broadcast %56 : vector<1x64xf32> to vector<128x64xf32>
    %60 = arith.mulf %39, %59 : vector<128x64xf32>
    %61 = vector.broadcast %58 : vector<1x64xf32> to vector<128x64xf32>
    %62 = arith.addf %60, %61 : vector<128x64xf32>
    %cst_21 = arith.constant 0.000000e+00 : f32
    %63 = vector.broadcast %cst_21 : f32 to vector<128x64xf32>
    %64 = arith.maximumf %62, %63 : vector<128x64xf32>
    %65 = arith.truncf %64 : vector<128x64xf32> to vector<128x64xbf16>
    %c0_22 = arith.constant 0 : index
    %c0_23 = arith.constant 0 : index
    %66 = vector.load %arg3[%c0_22, %c0_23] : memref<64x128xbf16, #tpu.memory_space<vmem>>, vector<64x128xbf16>
    %cst_24 = arith.constant dense<0.000000e+00> : vector<128x128xf32>
    %67 = tpu.matmul %65, %66, %cst_24 {dimension_numbers = #tpu.dot_dimension_numbers<[1], [0], [0], [1], [0, 0, 1, 1], [], []>} : vector<128x64xbf16>, vector<64x128xbf16>, vector<128x128xf32> -> vector<128x128xf32>
    %68 = vector.extract_strided_slice %67 {offsets = [0, 0], sizes = [128, 64], strides = [1, 1]} : vector<128x128xf32> to vector<128x64xf32>
    %cst_25 = arith.constant dense<0.000000e+00> : vector<64xf32>
    %69 = vector.multi_reduction <add>, %68, %cst_25 [0] : vector<128x64xf32> to vector<64xf32>
    %70 = vector.shape_cast %69 : vector<64xf32> to vector<1x64xf32>
    %cst_26 = arith.constant 7.812500e-03 : f32
    %71 = vector.broadcast %cst_26 : f32 to vector<1x64xf32>
    %72 = arith.mulf %70, %71 : vector<1x64xf32>
    %73 = arith.mulf %68, %68 : vector<128x64xf32>
    %cst_27 = arith.constant dense<0.000000e+00> : vector<64xf32>
    %74 = vector.multi_reduction <add>, %73, %cst_27 [0] : vector<128x64xf32> to vector<64xf32>
    %75 = vector.shape_cast %74 : vector<64xf32> to vector<1x64xf32>
    %cst_28 = arith.constant 7.812500e-03 : f32
    %76 = vector.broadcast %cst_28 : f32 to vector<1x64xf32>
    %77 = arith.mulf %75, %76 : vector<1x64xf32>
    %78 = arith.mulf %72, %72 : vector<1x64xf32>
    %79 = arith.subf %77, %78 : vector<1x64xf32>
    %cst_29 = arith.constant 0.000000e+00 : f32
    %80 = vector.broadcast %cst_29 : f32 to vector<1x64xf32>
    %81 = arith.maximumf %79, %80 : vector<1x64xf32>
    %cst_30 = arith.constant 9.99999974E-6 : f32
    %82 = vector.broadcast %cst_30 : f32 to vector<1x64xf32>
    %83 = arith.addf %81, %82 : vector<1x64xf32>
    %84 = math.rsqrt %83 : vector<1x64xf32>
    %85 = arith.mulf %5, %84 : vector<1x64xf32>
    %86 = arith.mulf %72, %85 : vector<1x64xf32>
    %87 = arith.subf %6, %86 : vector<1x64xf32>
    %88 = vector.broadcast %85 : vector<1x64xf32> to vector<128x64xf32>
    %89 = arith.mulf %68, %88 : vector<128x64xf32>
    %90 = vector.broadcast %87 : vector<1x64xf32> to vector<128x64xf32>
    %91 = arith.addf %89, %90 : vector<128x64xf32>
    %cst_31 = arith.constant 0.000000e+00 : f32
    %92 = vector.broadcast %cst_31 : f32 to vector<128x64xf32>
    %93 = arith.maximumf %91, %92 : vector<128x64xf32>
    %94 = arith.truncf %93 : vector<128x64xf32> to vector<128x64xbf16>
    %c0_32 = arith.constant 0 : index
    %c0_33 = arith.constant 0 : index
    %95 = vector.load %arg4[%c0_32, %c0_33] : memref<64x128xbf16, #tpu.memory_space<vmem>>, vector<64x128xbf16>
    %cst_34 = arith.constant dense<0.000000e+00> : vector<128x128xf32>
    %96 = tpu.matmul %94, %95, %cst_34 {dimension_numbers = #tpu.dot_dimension_numbers<[1], [0], [0], [1], [0, 0, 1, 1], [], []>} : vector<128x64xbf16>, vector<64x128xbf16>, vector<128x128xf32> -> vector<128x128xf32>
    %97 = tpu.iota {dimensions = array<i32: 1>} : vector<128x128xi32>
    %c64_i32 = arith.constant 64 : i32
    %98 = vector.broadcast %c64_i32 : i32 to vector<128x128xi32>
    %99 = arith.cmpi slt, %97, %98 : vector<128x128xi32>
    %100 = arith.select %99, %96, %67 : vector<128x128xi1>, vector<128x128xf32>
    %101 = vector.broadcast %7 : vector<1x128xf32> to vector<128x128xf32>
    %102 = arith.addf %100, %101 : vector<128x128xf32>
    %c0_35 = arith.constant 0 : index
    %c0_36 = arith.constant 0 : index
    %103 = vector.load %arg6[%c0_35, %c0_36] : memref<128x128xf32, #tpu.memory_space<vmem>>, vector<128x128xf32>
    tpu.vector_store %arg6[%c0_35, %c0_36], %102 {strides = array<i32>} : memref<128x128xf32, #tpu.memory_space<vmem>>, vector<128x128xf32>,
    return
  }
}

</mosaic_0001>

<llo_original>
// kernel: tpu_custom_call.1
$region0: #{tpu_custom_call.1}
  #allocation0 [shape = 'u32[]', space=smem, size = 0x4, offset = 0x4, fixed_abs, tag = 'smem constant byte address 0x4 - core index']
  #allocation1 [shape = 'u32[72,128]{1,0:T(1,128)}', space=vmem, size = 0x9000, scoped, tag = 'internal scratch']
  %s0 = inlined_call_operand.vmem [shape: f32[128,784], index: 0, kind: input, shape index: {}]
  %s1 = inlined_call_operand.vmem [shape: bf16[784,256], index: 1, kind: input, shape index: {}]
  %s2 = inlined_call_operand.vmem [shape: bf16[256,64], index: 2, kind: input, shape index: {}]
  %s3 = inlined_call_operand.vmem [shape: bf16[64,128], index: 3, kind: input, shape index: {}]
  %s4 = inlined_call_operand.vmem [shape: bf16[64,128], index: 4, kind: input, shape index: {}]
  %s5 = inlined_call_operand.vmem [shape: f32[3,640], index: 5, kind: input, shape index: {}]
  %s6 = inlined_call_operand.hbm [shape: f32[128,128], index: 6, kind: output, shape index: {}]
  %s7 = sld [smem:[#allocation0]]
  $region34: #{tpu_custom_call.1} parent=0
    _
  %s9 = ssub.s32 1, %s7
  %s10 = scalar_select 0, %s9, %s7
  $region1: #{tpu_custom_call.1} parent=0
    #allocation2 [shape = 'u8[65536]{0}', space=vmem, size = 0x10000, scoped, tag = 'output window, operand 0, single buffered']
    #allocation3 [shape = 's32[1]{0}', space=sflag, size = 0x4, scoped, tag = 'scoped memory for tpu_custom_call.1']
    %11 = vsyncpa [#allocation3], 0
    // Predicated region
    $region2: #{tpu_custom_call.1} parent=1 // pred_check
      _
    $region3: #{tpu_custom_call.1} parent=1 // pred_check_branch
      %13 = sbr.rel (0) target = $region5
    $region4: #{tpu_custom_call.1} parent=1 // pred_region
      _
    $region5: #{tpu_custom_call.1} parent=1 // pred_fallthru
      _
    // Predicated region
    $region6: #{tpu_custom_call.1} parent=1 // pred_check
      _
    $region7: #{tpu_custom_call.1} parent=1 // pred_check_branch
      %15 = sbr.rel (0) target = $region9
    $region8: #{tpu_custom_call.1} parent=1 // pred_region
      _
    $region9: #{tpu_custom_call.1} parent=1 // pred_fallthru
      _
    // Predicated region
    $region10: #{tpu_custom_call.1} parent=1 // pred_check
      _
    $region11: #{tpu_custom_call.1} parent=1 // pred_check_branch
      %17 = sbr.rel (0) target = $region13
    $region12: #{tpu_custom_call.1} parent=1 // pred_region
      _
    $region13: #{tpu_custom_call.1} parent=1 // pred_fallthru
      _
    // Predicated region
    $region14: #{tpu_custom_call.1} parent=1 // pred_check
      _
    $region15: #{tpu_custom_call.1} parent=1 // pred_check_branch
      %19 = sbr.rel (0) target = $region17
    $region16: #{tpu_custom_call.1} parent=1 // pred_region
      _
    $region17: #{tpu_custom_call.1} parent=1 // pred_fallthru
      _
    // Predicated region
    $region18: #{tpu_custom_call.1} parent=1 // pred_check
      _
    $region19: #{tpu_custom_call.1} parent=1 // pred_check_branch
      %21 = sbr.rel (0) target = $region21
    $region20: #{tpu_custom_call.1} parent=1 // pred_region
      _
    $region21: #{tpu_custom_call.1} parent=1 // pred_fallthru
      _
    // Predicated region
    $region22: #{tpu_custom_call.1} parent=1 // pred_check
      _
    $region23: #{tpu_custom_call.1} parent=1 // pred_check_branch
      %23 = sbr.rel (0) target = $region25
    $region24: #{tpu_custom_call.1} parent=1 // pred_region
      _
    $region25: #{tpu_custom_call.1} parent=1 // pred_fallthru
      _
    %v25 = vld [vmem:[%s5] sm:$0x77]
    %v26 = vld [vmem:[%s5 + $0x8] sm:$0x77]
    %v27 = vld [vmem:[%s5 + $0x10] sm:$0x7]
    %v28 = vld [vmem:[%s0] sm:$0xff]
    %v29 = vld [vmem:[%s0 + $0x8] sm:$0xff]
    %v30 = vld [vmem:[%s0 + $0x10] sm:$0xff]
    %v31 = vld [vmem:[%s0 + $0x18] sm:$0xff]
    %v32 = vld [vmem:[%s0 + $0x20] sm:$0xff]
    %v33 = vld [vmem:[%s0 + $0x28] sm:$0xff]
    %v34 = vld [vmem:[%s0 + $0x30] sm:$0xff]
    %v35 = vld [vmem:[%s0 + $0x38] sm:$0xff]
    %v36 = vld [vmem:[%s0 + $0x40] sm:$0xff]
    %v37 = vld [vmem:[%s0 + $0x48] sm:$0xff]
    %v38 = vld [vmem:[%s0 + $0x50] sm:$0xff]
    %v39 = vld [vmem:[%s0 + $0x58] sm:$0xff]
    %v40 = vld [vmem:[%s0 + $0x60] sm:$0xff]
    %v41 = vld [vmem:[%s0 + $0x68] sm:$0xff]
    %v42 = vld [vmem:[%s0 + $0x70] sm:$0xff]
    %v43 = vld [vmem:[%s0 + $0x78] sm:$0xff]
    %v44 = vld [vmem:[%s0 + $0x80] sm:$0xff]
    %v45 = vld [vmem:[%s0 + $0x88] sm:$0xff]
    %v46 = vld [vmem:[%s0 + $0x90] sm:$0xff]
    %v47 = vld [vmem:[%s0 + $0x98] sm:$0xff]
    %v48 = vld [vmem:[%s0 + $0xa0] sm:$0xff]
    %v49 = vld [vmem:[%s0 + $0xa8] sm:$0xff]
    %v50 = vld [vmem:[%s0 + $0xb0] sm:$0xff]
    %v51 = vld [vmem:[%s0 + $0xb8] sm:$0xff]
    %v52 = vld [vmem:[%s0 + $0xc0] sm:$0xff]
    %v53 = vld [vmem:[%s0 + $0xc8] sm:$0xff]
    %v54 = vld [vmem:[%s0 + $0xd0] sm:$0xff]
    %v55 = vld [vmem:[%s0 + $0xd8] sm:$0xff]
    %v56 = vld [vmem:[%s0 + $0xe0] sm:$0xff]
    %v57 = vld [vmem:[%s0 + $0xe8] sm:$0xff]
    %v58 = vld [vmem:[%s0 + $0xf0] sm:$0xff]
    %v59 = vld [vmem:[%s0 + $0xf8] sm:$0xff]
    %v60 = vld [vmem:[%s0 + $0x100] sm:$0xff]
    %v61 = vld [vmem:[%s0 + $0x108] sm:$0xff]
    %v62 = vld [vmem:[%s0 + $0x110] sm:$0xff]
    %v63 = vld [vmem:[%s0 + $0x118] sm:$0xff]
    %v64 = vld [vmem:[%s0 + $0x120] sm:$0xff]
    %v65 = vld [vmem:[%s0 + $0x128] sm:$0xff]
    %v66 = vld [vmem:[%s0 + $0x130] sm:$0xff]
    %v67 = vld [vmem:[%s0 + $0x138] sm:$0xff]
    %v68 = vld [vmem:[%s0 + $0x140] sm:$0xff]
    %v69 = vld [vmem:[%s0 + $0x148] sm:$0xff]
    %v70 = vld [vmem:[%s0 + $0x150] sm:$0xff]
    %v71 = vld [vmem:[%s0 + $0x158] sm:$0xff]
    %v72 = vld [vmem:[%s0 + $0x160] sm:$0xff]
    %v73 = vld [vmem:[%s0 + $0x168] sm:$0xff]
    %v74 = vld [vmem:[%s0 + $0x170] sm:$0xff]
    %v75 = vld [vmem:[%s0 + $0x178] sm:$0xff]
    %v76 = vld [vmem:[%s0 + $0x180] sm:$0xff]
    %v77 = vld [vmem:[%s0 + $0x188] sm:$0xff]
    %v78 = vld [vmem:[%s0 + $0x190] sm:$0xff]
    %v79 = vld [vmem:[%s0 + $0x198] sm:$0xff]
    %v80 = vld [vmem:[%s0 + $0x1a0] sm:$0xff]
    %v81 = vld [vmem:[%s0 + $0x1a8] sm:$0xff]
    %v82 = vld [vmem:[%s0 + $0x1b0] sm:$0xff]
    %v83 = vld [vmem:[%s0 + $0x1b8] sm:$0xff]
    %v84 = vld [vmem:[%s0 + $0x1c0] sm:$0xff]
    %v85 = vld [vmem:[%s0 + $0x1c8] sm:$0xff]
    %v86 = vld [vmem:[%s0 + $0x1d0] sm:$0xff]
    %v87 = vld [vmem:[%s0 + $0x1d8] sm:$0xff]
    %v88 = vld [vmem:[%s0 + $0x1e0] sm:$0xff]
    %v89 = vld [vmem:[%s0 + $0x1e8] sm:$0xff]
    %v90 = vld [vmem:[%s0 + $0x1f0] sm:$0xff]
    %v91 = vld [vmem:[%s0 + $0x1f8] sm:$0xff]
    %v92 = vld [vmem:[%s0 + $0x200] sm:$0xff]
    %v93 = vld [vmem:[%s0 + $0x208] sm:$0xff]
    %v94 = vld [vmem:[%s0 + $0x210] sm:$0xff]
    %v95 = vld [vmem:[%s0 + $0x218] sm:$0xff]
    %v96 = vld [vmem:[%s0 + $0x220] sm:$0xff]
    %v97 = vld [vmem:[%s0 + $0x228] sm:$0xff]
    %v98 = vld [vmem:[%s0 + $0x230] sm:$0xff]
    %v99 = vld [vmem:[%s0 + $0x238] sm:$0xff]
    %v100 = vld [vmem:[%s0 + $0x240] sm:$0xff]
    %v101 = vld [vmem:[%s0 + $0x248] sm:$0xff]
    %v102 = vld [vmem:[%s0 + $0x250] sm:$0xff]
    %v103 = vld [vmem:[%s0 + $0x258] sm:$0xff]
    %v104 = vld [vmem:[%s0 + $0x260] sm:$0xff]
    %v105 = vld [vmem:[%s0 + $0x268] sm:$0xff]
    %v106 = vld [vmem:[%s0 + $0x270] sm:$0xff]
    %v107 = vld [vmem:[%s0 + $0x278] sm:$0xff]
    %v108 = vld [vmem:[%s0 + $0x280] sm:$0xff]
    %v109 = vld [vmem:[%s0 + $0x288] sm:$0xff]
    %v110 = vld [vmem:[%s0 + $0x290] sm:$0xff]
    %v111 = vld [vmem:[%s0 + $0x298] sm:$0xff]
    %v112 = vld [vmem:[%s0 + $0x2a0] sm:$0xff]
    %v113 = vld [vmem:[%s0 + $0x2a8] sm:$0xff]
    %v114 = vld [vmem:[%s0 + $0x2b0] sm:$0xff]
    %v115 = vld [vmem:[%s0 + $0x2b8] sm:$0xff]
    %v116 = vld [vmem:[%s0 + $0x2c0] sm:$0xff]
    %v117 = vld [vmem:[%s0 + $0x2c8] sm:$0xff]
    %v118 = vld [vmem:[%s0 + $0x2d0] sm:$0xff]
    %v119 = vld [vmem:[%s0 + $0x2d8] sm:$0xff]
    %v120 = vld [vmem:[%s0 + $0x2e0] sm:$0xff]
    %v121 = vld [vmem:[%s0 + $0x2e8] sm:$0xff]
    %v122 = vld [vmem:[%s0 + $0x2f0] sm:$0xff]
    %v123 = vld [vmem:[%s0 + $0x2f8] sm:$0xff]
    %v124 = vld [vmem:[%s0 + $0x300] sm:$0xff]
    %v125 = vld [vmem:[%s0 + $0x308] sm:$0xff]
    %v126 = vld [vmem:[%s0 + $0x310] sm:$0xff]
    %v127 = vld [vmem:[%s0 + $0x318] sm:$0xff]
    %v128 = vld [vmem:[%s0 + $0x320] sm:$0xff]
    %v129 = vld [vmem:[%s0 + $0x328] sm:$0xff]
    %v130 = vld [vmem:[%s0 + $0x330] sm:$0xff]
    %v131 = vld [vmem:[%s0 + $0x338] sm:$0xff]
    %v132 = vld [vmem:[%s0 + $0x340] sm:$0xff]
    %v133 = vld [vmem:[%s0 + $0x348] sm:$0xff]
    %v134 = vld [vmem:[%s0 + $0x350] sm:$0xff]
    %v135 = vld [vmem:[%s0 + $0x358] sm:$0xff]
    %v136 = vld [vmem:[%s0 + $0x360] sm:$0xff]
    %v137 = vld [vmem:[%s0 + $0x368] sm:$0xff]
    %v138 = vld [vmem:[%s0 + $0x370] sm:$0xff]
    %v139 = vld [vmem:[%s0 + $0x378] sm:$0xff]
    %v140 = vpack.c.bf16 %v35, %v28
    %v141 = vpack.c.bf16 %v36, %v29
    %v142 = vpack.c.bf16 %v37, %v30
    %v143 = vpack.c.bf16 %v38, %v31
    %v144 = vpack.c.bf16 %v39, %v32
    %v145 = vpack.c.bf16 %v40, %v33
    %v146 = vpack.c.bf16 %v41, %v34
    %v147 = vpack.c.bf16 %v49, %v42
    %v148 = vpack.c.bf16 %v50, %v43
    %v149 = vpack.c.bf16 %v51, %v44
    %v150 = vpack.c.bf16 %v52, %v45
    %v151 = vpack.c.bf16 %v53, %v46
    %v152 = vpack.c.bf16 %v54, %v47
    %v153 = vpack.c.bf16 %v55, %v48
    %v154 = vpack.c.bf16 %v63, %v56
    %v155 = vpack.c.bf16 %v64, %v57
    %v156 = vpack.c.bf16 %v65, %v58
    %v157 = vpack.c.bf16 %v66, %v59
    %v158 = vpack.c.bf16 %v67, %v60
    %v159 = vpack.c.bf16 %v68, %v61
    %v160 = vpack.c.bf16 %v69, %v62
    %v161 = vpack.c.bf16 %v77, %v70
    %v162 = vpack.c.bf16 %v78, %v71
    %v163 = vpack.c.bf16 %v79, %v72
    %v164 = vpack.c.bf16 %v80, %v73
    %v165 = vpack.c.bf16 %v81, %v74
    %v166 = vpack.c.bf16 %v82, %v75
    %v167 = vpack.c.bf16 %v83, %v76
    %v168 = vpack.c.bf16 %v91, %v84
    %v169 = vpack.c.bf16 %v92, %v85
    %v170 = vpack.c.bf16 %v93, %v86
    %v171 = vpack.c.bf16 %v94, %v87
    %v172 = vpack.c.bf16 %v95, %v88
    %v173 = vpack.c.bf16 %v96, %v89
    %v174 = vpack.c.bf16 %v97, %v90
    %v175 = vpack.c.bf16 %v105, %v98
    %v176 = vpack.c.bf16 %v106, %v99
    %v177 = vpack.c.bf16 %v107, %v100
    %v178 = vpack.c.bf16 %v108, %v101
    %v179 = vpack.c.bf16 %v109, %v102
    %v180 = vpack.c.bf16 %v110, %v103
    %v181 = vpack.c.bf16 %v111, %v104
    %v182 = vpack.c.bf16 %v119, %v112
    %v183 = vpack.c.bf16 %v120, %v113
    %v184 = vpack.c.bf16 %v121, %v114
    %v185 = vpack.c.bf16 %v122, %v115
    %v186 = vpack.c.bf16 %v123, %v116
    %v187 = vpack.c.bf16 %v124, %v117
    %v188 = vpack.c.bf16 %v125, %v118
    %v189 = vpack.c.bf16 %v133, %v126
    %v190 = vpack.c.bf16 %v134, %v127
    %v191 = vpack.c.bf16 %v135, %v128
    %v192 = vpack.c.bf16 %v136, %v129
    %v193 = vpack.c.bf16 %v137, %v130
    %v194 = vpack.c.bf16 %v138, %v131
    %v195 = vpack.c.bf16 %v139, %v132
    %v196 = vld [vmem:[%s1] sm:$0xff]
    %v197 = vld [vmem:[%s1 + $0x8] sm:$0xff]
    %v198 = vld [vmem:[%s1 + $0x10] sm:$0xff]
    %v199 = vld [vmem:[%s1 + $0x18] sm:$0xff]
    %v200 = vld [vmem:[%s1 + $0x20] sm:$0xff]
    %v201 = vld [vmem:[%s1 + $0x28] sm:$0xff]
    %v202 = vld [vmem:[%s1 + $0x30] sm:$0xff]
    %v203 = vld [vmem:[%s1 + $0x38] sm:$0xff]
    %v204 = vld [vmem:[%s1 + $0x40] sm:$0xff]
    %v205 = vld [vmem:[%s1 + $0x48] sm:$0xff]
    %v206 = vld [vmem:[%s1 + $0x50] sm:$0xff]
    %v207 = vld [vmem:[%s1 + $0x58] sm:$0xff]
    %v208 = vld [vmem:[%s1 + $0x60] sm:$0xff]
    %v209 = vld [vmem:[%s1 + $0x68] sm:$0xff]
    %v210 = vld [vmem:[%s1 + $0x70] sm:$0xff]
    %v211 = vld [vmem:[%s1 + $0x78] sm:$0xff]
    %v212 = vld [vmem:[%s1 + $0x80] sm:$0xff]
    %v213 = vld [vmem:[%s1 + $0x88] sm:$0xff]
    %v214 = vld [vmem:[%s1 + $0x90] sm:$0xff]
    %v215 = vld [vmem:[%s1 + $0x98] sm:$0xff]
    %v216 = vld [vmem:[%s1 + $0xa0] sm:$0xff]
    %v217 = vld [vmem:[%s1 + $0xa8] sm:$0xff]
    %v218 = vld [vmem:[%s1 + $0xb0] sm:$0xff]
    %v219 = vld [vmem:[%s1 + $0xb8] sm:$0xff]
    %v220 = vld [vmem:[%s1 + $0xc0] sm:$0xff]
    %v221 = vld [vmem:[%s1 + $0xc8] sm:$0xff]
    %v222 = vld [vmem:[%s1 + $0xd0] sm:$0xff]
    %v223 = vld [vmem:[%s1 + $0xd8] sm:$0xff]
    %v224 = vld [vmem:[%s1 + $0xe0] sm:$0xff]
    %v225 = vld [vmem:[%s1 + $0xe8] sm:$0xff]
    %v226 = vld [vmem:[%s1 + $0xf0] sm:$0xff]
    %v227 = vld [vmem:[%s1 + $0xf8] sm:$0xff]
    %v228 = vld [vmem:[%s1 + $0x100] sm:$0xff]
    %v229 = vld [vmem:[%s1 + $0x108] sm:$0xff]
    %v230 = vld [vmem:[%s1 + $0x110] sm:$0xff]
    %v231 = vld [vmem:[%s1 + $0x118] sm:$0xff]
    %v232 = vld [vmem:[%s1 + $0x120] sm:$0xff]
    %v233 = vld [vmem:[%s1 + $0x128] sm:$0xff]
    %v234 = vld [vmem:[%s1 + $0x130] sm:$0xff]
    %v235 = vld [vmem:[%s1 + $0x138] sm:$0xff]
    %v236 = vld [vmem:[%s1 + $0x140] sm:$0xff]
    %v237 = vld [vmem:[%s1 + $0x148] sm:$0xff]
    %v238 = vld [vmem:[%s1 + $0x150] sm:$0xff]
    %v239 = vld [vmem:[%s1 + $0x158] sm:$0xff]
    %v240 = vld [vmem:[%s1 + $0x160] sm:$0xff]
    %v241 = vld [vmem:[%s1 + $0x168] sm:$0xff]
    %v242 = vld [vmem:[%s1 + $0x170] sm:$0xff]
    %v243 = vld [vmem:[%s1 + $0x178] sm:$0xff]
    %v244 = vld [vmem:[%s1 + $0x180] sm:$0xff]
    %v245 = vld [vmem:[%s1 + $0x188] sm:$0xff]
    %v246 = vld [vmem:[%s1 + $0x190] sm:$0xff]
    %v247 = vld [vmem:[%s1 + $0x198] sm:$0xff]
    %v248 = vld [vmem:[%s1 + $0x1a0] sm:$0xff]
    %v249 = vld [vmem:[%s1 + $0x1a8] sm:$0xff]
    %v250 = vld [vmem:[%s1 + $0x1b0] sm:$0xff]
    %v251 = vld [vmem:[%s1 + $0x1b8] sm:$0xff]
    %v252 = vld [vmem:[%s1 + $0x1c0] sm:$0xff]
    %v253 = vld [vmem:[%s1 + $0x1c8] sm:$0xff]
    %v254 = vld [vmem:[%s1 + $0x1d0] sm:$0xff]
    %v255 = vld [vmem:[%s1 + $0x1d8] sm:$0xff]
    %v256 = vld [vmem:[%s1 + $0x1e0] sm:$0xff]
    %v257 = vld [vmem:[%s1 + $0x1e8] sm:$0xff]
    %v258 = vld [vmem:[%s1 + $0x1f0] sm:$0xff]
    %v259 = vld [vmem:[%s1 + $0x1f8] sm:$0xff]
    %v260 = vld [vmem:[%s1 + $0x200] sm:$0xff]
    %v261 = vld [vmem:[%s1 + $0x208] sm:$0xff]
    %v262 = vld [vmem:[%s1 + $0x210] sm:$0xff]
    %v263 = vld [vmem:[%s1 + $0x218] sm:$0xff]
    %v264 = vld [vmem:[%s1 + $0x220] sm:$0xff]
    %v265 = vld [vmem:[%s1 + $0x228] sm:$0xff]
    %v266 = vld [vmem:[%s1 + $0x230] sm:$0xff]
    %v267 = vld [vmem:[%s1 + $0x238] sm:$0xff]
    %v268 = vld [vmem:[%s1 + $0x240] sm:$0xff]
    %v269 = vld [vmem:[%s1 + $0x248] sm:$0xff]
    %v270 = vld [vmem:[%s1 + $0x250] sm:$0xff]
    %v271 = vld [vmem:[%s1 + $0x258] sm:$0xff]
    %v272 = vld [vmem:[%s1 + $0x260] sm:$0xff]
    %v273 = vld [vmem:[%s1 + $0x268] sm:$0xff]
    %v274 = vld [vmem:[%s1 + $0x270] sm:$0xff]
    %v275 = vld [vmem:[%s1 + $0x278] sm:$0xff]
    %v276 = vld [vmem:[%s1 + $0x280] sm:$0xff]
    %v277 = vld [vmem:[%s1 + $0x288] sm:$0xff]
    %v278 = vld [vmem:[%s1 + $0x290] sm:$0xff]
    %v279 = vld [vmem:[%s1 + $0x298] sm:$0xff]
    %v280 = vld [vmem:[%s1 + $0x2a0] sm:$0xff]
    %v281 = vld [vmem:[%s1 + $0x2a8] sm:$0xff]
    %v282 = vld [vmem:[%s1 + $0x2b0] sm:$0xff]
    %v283 = vld [vmem:[%s1 + $0x2b8] sm:$0xff]
    %v284 = vld [vmem:[%s1 + $0x2c0] sm:$0xff]
    %v285 = vld [vmem:[%s1 + $0x2c8] sm:$0xff]
    %v286 = vld [vmem:[%s1 + $0x2d0] sm:$0xff]
    %v287 = vld [vmem:[%s1 + $0x2d8] sm:$0xff]
    %v288 = vld [vmem:[%s1 + $0x2e0] sm:$0xff]
    %v289 = vld [vmem:[%s1 + $0x2e8] sm:$0xff]
    %v290 = vld [vmem:[%s1 + $0x2f0] sm:$0xff]
    %v291 = vld [vmem:[%s1 + $0x2f8] sm:$0xff]
    %v292 = vld [vmem:[%s1 + $0x300] sm:$0xff]
    %v293 = vld [vmem:[%s1 + $0x308] sm:$0xff]
    %v392 = vunpack.c.l.b16 %v196
    %v393 = vunpack.c.h.b16 %v196
    %v394 = vunpack.c.l.b16 %v197
    %v395 = vunpack.c.h.b16 %v197
    %v396 = vunpack.c.l.b16 %v198
    %v397 = vunpack.c.h.b16 %v198
    %v398 = vunpack.c.l.b16 %v199
    %v399 = vunpack.c.h.b16 %v199
    %v400 = vunpack.c.l.b16 %v200
    %v401 = vunpack.c.h.b16 %v200
    %v402 = vunpack.c.l.b16 %v201
    %v403 = vunpack.c.h.b16 %v201
    %v404 = vunpack.c.l.b16 %v202
    %v405 = vunpack.c.h.b16 %v202
    %v406 = vunpack.c.l.b16 %v203
    %v407 = vunpack.c.h.b16 %v203
    %v408 = vunpack.c.l.b16 %v204
    %v409 = vunpack.c.h.b16 %v204
    %v410 = vunpack.c.l.b16 %v205
    %v411 = vunpack.c.h.b16 %v205
    %v412 = vunpack.c.l.b16 %v206
    %v413 = vunpack.c.h.b16 %v206
    %v414 = vunpack.c.l.b16 %v207
    %v415 = vunpack.c.h.b16 %v207
    %v416 = vunpack.c.l.b16 %v208
    %v417 = vunpack.c.h.b16 %v208
    %v418 = vunpack.c.l.b16 %v209
    %v419 = vunpack.c.h.b16 %v209
    %v420 = vunpack.c.l.b16 %v210
    %v421 = vunpack.c.h.b16 %v210
    %v422 = vunpack.c.l.b16 %v211
    %v423 = vunpack.c.h.b16 %v211
    %v424 = vunpack.c.l.b16 %v212
    %v425 = vunpack.c.h.b16 %v212
    %v426 = vunpack.c.l.b16 %v213
    %v427 = vunpack.c.h.b16 %v213
    %v428 = vunpack.c.l.b16 %v214
    %v429 = vunpack.c.h.b16 %v214
    %v430 = vunpack.c.l.b16 %v215
    %v431 = vunpack.c.h.b16 %v215
    %v432 = vunpack.c.l.b16 %v216
    %v433 = vunpack.c.h.b16 %v216
    %v434 = vunpack.c.l.b16 %v217
    %v435 = vunpack.c.h.b16 %v217
    %v436 = vunpack.c.l.b16 %v218
    %v437 = vunpack.c.h.b16 %v218
    %v438 = vunpack.c.l.b16 %v219
    %v439 = vunpack.c.h.b16 %v219
    %v440 = vunpack.c.l.b16 %v220
    %v441 = vunpack.c.h.b16 %v220
    %v442 = vunpack.c.l.b16 %v221
    %v443 = vunpack.c.h.b16 %v221
    %v444 = vunpack.c.l.b16 %v222
    %v445 = vunpack.c.h.b16 %v222
    %v446 = vunpack.c.l.b16 %v223
    %v447 = vunpack.c.h.b16 %v223
    %v448 = vunpack.c.l.b16 %v224
    %v449 = vunpack.c.h.b16 %v224
    %v450 = vunpack.c.l.b16 %v225
    %v451 = vunpack.c.h.b16 %v225
    %v452 = vunpack.c.l.b16 %v226
    %v453 = vunpack.c.h.b16 %v226
    %v454 = vunpack.c.l.b16 %v227
    %v455 = vunpack.c.h.b16 %v227
    %v456 = vunpack.c.l.b16 %v228
    %v457 = vunpack.c.h.b16 %v228
    %v458 = vunpack.c.l.b16 %v229
    %v459 = vunpack.c.h.b16 %v229
    %v460 = vunpack.c.l.b16 %v230
    %v461 = vunpack.c.h.b16 %v230
    %v462 = vunpack.c.l.b16 %v231
    %v463 = vunpack.c.h.b16 %v231
    %v464 = vunpack.c.l.b16 %v232
    %v465 = vunpack.c.h.b16 %v232
    %v466 = vunpack.c.l.b16 %v233
    %v467 = vunpack.c.h.b16 %v233
    %v468 = vunpack.c.l.b16 %v234
    %v469 = vunpack.c.h.b16 %v234
    %v470 = vunpack.c.l.b16 %v235
    %v471 = vunpack.c.h.b16 %v235
    %v472 = vunpack.c.l.b16 %v236
    %v473 = vunpack.c.h.b16 %v236
    %v474 = vunpack.c.l.b16 %v237
    %v475 = vunpack.c.h.b16 %v237
    %v476 = vunpack.c.l.b16 %v238
    %v477 = vunpack.c.h.b16 %v238
    %v478 = vunpack.c.l.b16 %v239
    %v479 = vunpack.c.h.b16 %v239
    %v480 = vunpack.c.l.b16 %v240
    %v481 = vunpack.c.h.b16 %v240
    %v482 = vunpack.c.l.b16 %v241
    %v483 = vunpack.c.h.b16 %v241
    %v484 = vunpack.c.l.b16 %v242
    %v485 = vunpack.c.h.b16 %v242
    %v486 = vunpack.c.l.b16 %v243
    %v487 = vunpack.c.h.b16 %v243
    %v488 = vunpack.c.l.b16 %v244
    %v489 = vunpack.c.h.b16 %v244
    %v490 = vunpack.c.l.b16 %v245
    %v491 = vunpack.c.h.b16 %v245
    %v492 = vunpack.c.l.b16 %v246
    %v493 = vunpack.c.h.b16 %v246
    %v494 = vunpack.c.l.b16 %v247
    %v495 = vunpack.c.h.b16 %v247
    %v496 = vunpack.c.l.b16 %v248
    %v497 = vunpack.c.h.b16 %v248
    %v498 = vunpack.c.l.b16 %v249
    %v499 = vunpack.c.h.b16 %v249
    %v500 = vunpack.c.l.b16 %v250
    %v501 = vunpack.c.h.b16 %v250
    %v502 = vunpack.c.l.b16 %v251
    %v503 = vunpack.c.h.b16 %v251
    %v504 = vunpack.c.l.b16 %v252
    %v505 = vunpack.c.h.b16 %v252
    %v506 = vunpack.c.l.b16 %v253
    %v507 = vunpack.c.h.b16 %v253
    %v508 = vunpack.c.l.b16 %v254
    %v509 = vunpack.c.h.b16 %v254
    %v510 = vunpack.c.l.b16 %v255
    %v511 = vunpack.c.h.b16 %v255
    %v512 = vunpack.c.l.b16 %v256
    %v513 = vunpack.c.h.b16 %v256
    %v514 = vunpack.c.l.b16 %v257
    %v515 = vunpack.c.h.b16 %v257
    %v516 = vunpack.c.l.b16 %v258
    %v517 = vunpack.c.h.b16 %v258
    %v518 = vunpack.c.l.b16 %v259
    %v519 = vunpack.c.h.b16 %v259
    %v520 = vunpack.c.l.b16 %v260
    %v521 = vunpack.c.h.b16 %v260
    %v522 = vunpack.c.l.b16 %v261
    %v523 = vunpack.c.h.b16 %v261
    %v524 = vunpack.c.l.b16 %v262
    %v525 = vunpack.c.h.b16 %v262
    %v526 = vunpack.c.l.b16 %v263
    %v527 = vunpack.c.h.b16 %v263
    %v528 = vunpack.c.l.b16 %v264
    %v529 = vunpack.c.h.b16 %v264
    %v530 = vunpack.c.l.b16 %v265
    %v531 = vunpack.c.h.b16 %v265
    %v532 = vunpack.c.l.b16 %v266
    %v533 = vunpack.c.h.b16 %v266
    %v534 = vunpack.c.l.b16 %v267
    %v535 = vunpack.c.h.b16 %v267
    %v536 = vunpack.c.l.b16 %v268
    %v537 = vunpack.c.h.b16 %v268
    %v538 = vunpack.c.l.b16 %v269
    %v539 = vunpack.c.h.b16 %v269
    %v540 = vunpack.c.l.b16 %v270
    %v541 = vunpack.c.h.b16 %v270
    %v542 = vunpack.c.l.b16 %v271
    %v543 = vunpack.c.h.b16 %v271
    %v544 = vunpack.c.l.b16 %v272
    %v545 = vunpack.c.h.b16 %v272
    %v546 = vunpack.c.l.b16 %v273
    %v547 = vunpack.c.h.b16 %v273
    %v548 = vunpack.c.l.b16 %v274
    %v549 = vunpack.c.h.b16 %v274
    %v550 = vunpack.c.l.b16 %v275
    %v551 = vunpack.c.h.b16 %v275
    %v552 = vunpack.c.l.b16 %v276
    %v553 = vunpack.c.h.b16 %v276
    %v554 = vunpack.c.l.b16 %v277
    %v555 = vunpack.c.h.b16 %v277
    %v556 = vunpack.c.l.b16 %v278
    %v557 = vunpack.c.h.b16 %v278
    %v558 = vunpack.c.l.b16 %v279
    %v559 = vunpack.c.h.b16 %v279
    %v560 = vunpack.c.l.b16 %v280
    %v561 = vunpack.c.h.b16 %v280
    %v562 = vunpack.c.l.b16 %v281
    %v563 = vunpack.c.h.b16 %v281
    %v564 = vunpack.c.l.b16 %v282
    %v565 = vunpack.c.h.b16 %v282
    %v566 = vunpack.c.l.b16 %v283
    %v567 = vunpack.c.h.b16 %v283
    %v568 = vunpack.c.l.b16 %v284
    %v569 = vunpack.c.h.b16 %v284
    %v570 = vunpack.c.l.b16 %v285
    %v571 = vunpack.c.h.b16 %v285
    %v572 = vunpack.c.l.b16 %v286
    %v573 = vunpack.c.h.b16 %v286
    %v574 = vunpack.c.l.b16 %v287
    %v575 = vunpack.c.h.b16 %v287
    %v576 = vunpack.c.l.b16 %v288
    %v577 = vunpack.c.h.b16 %v288
    %v578 = vunpack.c.l.b16 %v289
    %v579 = vunpack.c.h.b16 %v289
    %v580 = vunpack.c.l.b16 %v290
    %v581 = vunpack.c.h.b16 %v290
    %v582 = vunpack.c.l.b16 %v291
    %v583 = vunpack.c.h.b16 %v291
    %v584 = vunpack.c.l.b16 %v292
    %v585 = vunpack.c.h.b16 %v292
    %v586 = vunpack.c.l.b16 %v293
    %v587 = vunpack.c.h.b16 %v293
    %v588 = vpack.c.b16 %v394, %v392
    %v589 = vpack.c.b16 %v395, %v393
    %v590 = vpack.c.b16 %v398, %v396
    %v591 = vpack.c.b16 %v399, %v397
    %v592 = vpack.c.b16 %v402, %v400
    %v593 = vpack.c.b16 %v403, %v401
    %v594 = vpack.c.b16 %v406, %v404
    %v595 = vpack.c.b16 %v407, %v405
    %v596 = vpack.c.b16 %v410, %v408
    %v597 = vpack.c.b16 %v411, %v409
    %v598 = vpack.c.b16 %v414, %v412
    %v599 = vpack.c.b16 %v415, %v413
    %v600 = vpack.c.b16 %v418, %v416
    %v601 = vpack.c.b16 %v419, %v417
    %v602 = vpack.c.b16 %v422, %v420
    %v603 = vpack.c.b16 %v423, %v421
    %v604 = vpack.c.b16 %v426, %v424
    %v605 = vpack.c.b16 %v427, %v425
    %v606 = vpack.c.b16 %v430, %v428
    %v607 = vpack.c.b16 %v431, %v429
    %v608 = vpack.c.b16 %v434, %v432
    %v609 = vpack.c.b16 %v435, %v433
    %v610 = vpack.c.b16 %v438, %v436
    %v611 = vpack.c.b16 %v439, %v437
    %v612 = vpack.c.b16 %v442, %v440
    %v613 = vpack.c.b16 %v443, %v441
    %v614 = vpack.c.b16 %v446, %v444
    %v615 = vpack.c.b16 %v447, %v445
    %v616 = vpack.c.b16 %v450, %v448
    %v617 = vpack.c.b16 %v451, %v449
    %v618 = vpack.c.b16 %v454, %v452
    %v619 = vpack.c.b16 %v455, %v453
    %v620 = vpack.c.b16 %v458, %v456
    %v621 = vpack.c.b16 %v459, %v457
    %v622 = vpack.c.b16 %v462, %v460
    %v623 = vpack.c.b16 %v463, %v461
    %v624 = vpack.c.b16 %v466, %v464
    %v625 = vpack.c.b16 %v467, %v465
    %v626 = vpack.c.b16 %v470, %v468
    %v627 = vpack.c.b16 %v471, %v469
    %v628 = vpack.c.b16 %v474, %v472
    %v629 = vpack.c.b16 %v475, %v473
    %v630 = vpack.c.b16 %v478, %v476
    %v631 = vpack.c.b16 %v479, %v477
    %v632 = vpack.c.b16 %v482, %v480
    %v633 = vpack.c.b16 %v483, %v481
    %v634 = vpack.c.b16 %v486, %v484
    %v635 = vpack.c.b16 %v487, %v485
    %v636 = vpack.c.b16 %v490, %v488
    %v637 = vpack.c.b16 %v491, %v489
    %v638 = vpack.c.b16 %v494, %v492
    %v639 = vpack.c.b16 %v495, %v493
    %v640 = vpack.c.b16 %v498, %v496
    %v641 = vpack.c.b16 %v499, %v497
    %v642 = vpack.c.b16 %v502, %v500
    %v643 = vpack.c.b16 %v503, %v501
    %v644 = vpack.c.b16 %v506, %v504
    %v645 = vpack.c.b16 %v507, %v505
    %v646 = vpack.c.b16 %v510, %v508
    %v647 = vpack.c.b16 %v511, %v509
    %v648 = vpack.c.b16 %v514, %v512
    %v649 = vpack.c.b16 %v515, %v513
    %v650 = vpack.c.b16 %v518, %v516
    %v651 = vpack.c.b16 %v519, %v517
    %v652 = vpack.c.b16 %v522, %v520
    %v653 = vpack.c.b16 %v523, %v521
    %v654 = vpack.c.b16 %v526, %v524
    %v655 = vpack.c.b16 %v527, %v525
    %v656 = vpack.c.b16 %v530, %v528
    %v657 = vpack.c.b16 %v531, %v529
    %v658 = vpack.c.b16 %v534, %v532
    %v659 = vpack.c.b16 %v535, %v533
    %v660 = vpack.c.b16 %v538, %v536
    %v661 = vpack.c.b16 %v539, %v537
    %v662 = vpack.c.b16 %v542, %v540
    %v663 = vpack.c.b16 %v543, %v541
    %v664 = vpack.c.b16 %v546, %v544
    %v665 = vpack.c.b16 %v547, %v545
    %v666 = vpack.c.b16 %v550, %v548
    %v667 = vpack.c.b16 %v551, %v549
    %v668 = vpack.c.b16 %v554, %v552
    %v669 = vpack.c.b16 %v555, %v553
    %v670 = vpack.c.b16 %v558, %v556
    %v671 = vpack.c.b16 %v559, %v557
    %v672 = vpack.c.b16 %v562, %v560
    %v673 = vpack.c.b16 %v563, %v561
    %v674 = vpack.c.b16 %v566, %v564
    %v675 = vpack.c.b16 %v567, %v565
    %v676 = vpack.c.b16 %v570, %v568
    %v677 = vpack.c.b16 %v571, %v569
    %v678 = vpack.c.b16 %v574, %v572
    %v679 = vpack.c.b16 %v575, %v573
    %v680 = vpack.c.b16 %v578, %v576
    %v681 = vpack.c.b16 %v579, %v577
    %v682 = vpack.c.b16 %v582, %v580
    %v683 = vpack.c.b16 %v583, %v581
    %v684 = vpack.c.b16 %v586, %v584
    %v685 = vpack.c.b16 %v587, %v585
    %vm784 = vcmask 130048
    %v786 = vsel %vm784, %v146, 0
    %v789 = vsel %vm784, %v153, 0
    %v792 = vsel %vm784, %v160, 0
    %v795 = vsel %vm784, %v167, 0
    %v798 = vsel %vm784, %v174, 0
    %v801 = vsel %vm784, %v181, 0
    %v804 = vsel %vm784, %v188, 0
    %v807 = vsel %vm784, %v195, 0
    %809 = vmatpush.bf16.msra.mxu0 %v602
    %810 = vmatpush.bf16.msra.mxu0 %v600
    %811 = vmatpush.bf16.msra.mxu0 %v598
    %812 = vmatpush.bf16.msra.mxu0 %v596
    %813 = vmatpush.bf16.msra.mxu0 %v594
    %814 = vmatpush.bf16.msra.mxu0 %v592
    %815 = vmatpush.bf16.msra.mxu0 %v590
    %816 = vmatpush.bf16.msra.mxu0 %v588
    %817 = vmatmul.bf16.gmra.mxu0 %v140
    %v818 = vpop.f32.mrf.mxu0
    %v819 = vadd.f32 0.0, %v818
    %v820 = vpop.f32.mrf.mxu0
    %v821 = vadd.f32 0.0, %v820
    %822 = vmatmul.bf16.gmra.mxu0 %v147
    %v823 = vpop.f32.mrf.mxu0
    %v824 = vadd.f32 0.0, %v823
    %v825 = vpop.f32.mrf.mxu0
    %v826 = vadd.f32 0.0, %v825
    %827 = vmatmul.bf16.gmra.mxu0 %v154
    %v828 = vpop.f32.mrf.mxu0
    %v829 = vadd.f32 0.0, %v828
    %v830 = vpop.f32.mrf.mxu0
    %v831 = vadd.f32 0.0, %v830
    %832 = vmatmul.bf16.gmra.mxu0 %v161
    %v833 = vpop.f32.mrf.mxu0
    %v834 = vadd.f32 0.0, %v833
    %v835 = vpop.f32.mrf.mxu0
    %v836 = vadd.f32 0.0, %v835
    %837 = vmatmul.bf16.gmra.mxu0 %v168
    %v838 = vpop.f32.mrf.mxu0
    %v839 = vadd.f32 0.0, %v838
    %v840 = vpop.f32.mrf.mxu0
    %v841 = vadd.f32 0.0, %v840
    %842 = vmatmul.bf16.gmra.mxu0 %v175
    %v843 = vpop.f32.mrf.mxu0
    %v844 = vadd.f32 0.0, %v843
    %v845 = vpop.f32.mrf.mxu0
    %v846 = vadd.f32 0.0, %v845
    %847 = vmatmul.bf16.gmra.mxu0 %v182
    %v848 = vpop.f32.mrf.mxu0
    %v849 = vadd.f32 0.0, %v848
    %v850 = vpop.f32.mrf.mxu0
    %v851 = vadd.f32 0.0, %v850
    %852 = vmatmul.bf16.gmra.mxu0 %v189
    %v853 = vpop.f32.mrf.mxu0
    %v854 = vadd.f32 0.0, %v853
    %v855 = vpop.f32.mrf.mxu0
    %v856 = vadd.f32 0.0, %v855
    %857 = vdwg.mxu0
    %858 = vmatpush.bf16.msra.mxu0 %v618
    %859 = vmatpush.bf16.msra.mxu0 %v616
    %860 = vmatpush.bf16.msra.mxu0 %v614
    %861 = vmatpush.bf16.msra.mxu0 %v612
    %862 = vmatpush.bf16.msra.mxu0 %v610
    %863 = vmatpush.bf16.msra.mxu0 %v608
    %864 = vmatpush.bf16.msra.mxu0 %v606
    %865 = vmatpush.bf16.msra.mxu0 %v604
    %866 = vmatmul.bf16.gmra.mxu0 %v141
    %v867 = vpop.f32.mrf.mxu0
    %v868 = vadd.f32 %v819, %v867
    %v869 = vpop.f32.mrf.mxu0
    %v870 = vadd.f32 %v821, %v869
    %871 = vmatmul.bf16.gmra.mxu0 %v148
    %v872 = vpop.f32.mrf.mxu0
    %v873 = vadd.f32 %v824, %v872
    %v874 = vpop.f32.mrf.mxu0
    %v875 = vadd.f32 %v826, %v874
    %876 = vmatmul.bf16.gmra.mxu0 %v155
    %v877 = vpop.f32.mrf.mxu0
    %v878 = vadd.f32 %v829, %v877
    %v879 = vpop.f32.mrf.mxu0
    %v880 = vadd.f32 %v831, %v879
    %881 = vmatmul.bf16.gmra.mxu0 %v162
    %v882 = vpop.f32.mrf.mxu0
    %v883 = vadd.f32 %v834, %v882
    %v884 = vpop.f32.mrf.mxu0
    %v885 = vadd.f32 %v836, %v884
    %886 = vmatmul.bf16.gmra.mxu0 %v169
    %v887 = vpop.f32.mrf.mxu0
    %v888 = vadd.f32 %v839, %v887
    %v889 = vpop.f32.mrf.mxu0
    %v890 = vadd.f32 %v841, %v889
    %891 = vmatmul.bf16.gmra.mxu0 %v176
    %v892 = vpop.f32.mrf.mxu0
    %v893 = vadd.f32 %v844, %v892
    %v894 = vpop.f32.mrf.mxu0
    %v895 = vadd.f32 %v846, %v894
    %896 = vmatmul.bf16.gmra.mxu0 %v183
    %v897 = vpop.f32.mrf.mxu0
    %v898 = vadd.f32 %v849, %v897
    %v899 = vpop.f32.mrf.mxu0
    %v900 = vadd.f32 %v851, %v899
    %901 = vmatmul.bf16.gmra.mxu0 %v190
    %v902 = vpop.f32.mrf.mxu0
    %v903 = vadd.f32 %v854, %v902
    %v904 = vpop.f32.mrf.mxu0
    %v905 = vadd.f32 %v856, %v904
    %906 = vdwg.mxu0
    %907 = vmatpush.bf16.msra.mxu0 %v634
    %908 = vmatpush.bf16.msra.mxu0 %v632
    %909 = vmatpush.bf16.msra.mxu0 %v630
    %910 = vmatpush.bf16.msra.mxu0 %v628
    %911 = vmatpush.bf16.msra.mxu0 %v626
    %912 = vmatpush.bf16.msra.mxu0 %v624
    %913 = vmatpush.bf16.msra.mxu0 %v622
    %914 = vmatpush.bf16.msra.mxu0 %v620
    %915 = vmatmul.bf16.gmra.mxu0 %v142
    %v916 = vpop.f32.mrf.mxu0
    %v917 = vadd.f32 %v868, %v916
    %v918 = vpop.f32.mrf.mxu0
    %v919 = vadd.f32 %v870, %v918
    %920 = vmatmul.bf16.gmra.mxu0 %v149
    %v921 = vpop.f32.mrf.mxu0
    %v922 = vadd.f32 %v873, %v921
    %v923 = vpop.f32.mrf.mxu0
    %v924 = vadd.f32 %v875, %v923
    %925 = vmatmul.bf16.gmra.mxu0 %v156
    %v926 = vpop.f32.mrf.mxu0
    %v927 = vadd.f32 %v878, %v926
    %v928 = vpop.f32.mrf.mxu0
    %v929 = vadd.f32 %v880, %v928
    %930 = vmatmul.bf16.gmra.mxu0 %v163
    %v931 = vpop.f32.mrf.mxu0
    %v932 = vadd.f32 %v883, %v931
    %v933 = vpop.f32.mrf.mxu0
    %v934 = vadd.f32 %v885, %v933
    %935 = vmatmul.bf16.gmra.mxu0 %v170
    %v936 = vpop.f32.mrf.mxu0
    %v937 = vadd.f32 %v888, %v936
    %v938 = vpop.f32.mrf.mxu0
    %v939 = vadd.f32 %v890, %v938
    %940 = vmatmul.bf16.gmra.mxu0 %v177
    %v941 = vpop.f32.mrf.mxu0
    %v942 = vadd.f32 %v893, %v941
    %v943 = vpop.f32.mrf.mxu0
    %v944 = vadd.f32 %v895, %v943
    %945 = vmatmul.bf16.gmra.mxu0 %v184
    %v946 = vpop.f32.mrf.mxu0
    %v947 = vadd.f32 %v898, %v946
    %v948 = vpop.f32.mrf.mxu0
    %v949 = vadd.f32 %v900, %v948
    %950 = vmatmul.bf16.gmra.mxu0 %v191
    %v951 = vpop.f32.mrf.mxu0
    %v952 = vadd.f32 %v903, %v951
    %v953 = vpop.f32.mrf.mxu0
    %v954 = vadd.f32 %v905, %v953
    %955 = vdwg.mxu0
    %956 = vmatpush.bf16.msra.mxu0 %v650
    %957 = vmatpush.bf16.msra.mxu0 %v648
    %958 = vmatpush.bf16.msra.mxu0 %v646
    %959 = vmatpush.bf16.msra.mxu0 %v644
    %960 = vmatpush.bf16.msra.mxu0 %v642
    %961 = vmatpush.bf16.msra.mxu0 %v640
    %962 = vmatpush.bf16.msra.mxu0 %v638
    %963 = vmatpush.bf16.msra.mxu0 %v636
    %964 = vmatmul.bf16.gmra.mxu0 %v143
    %v965 = vpop.f32.mrf.mxu0
    %v966 = vadd.f32 %v917, %v965
    %v967 = vpop.f32.mrf.mxu0
    %v968 = vadd.f32 %v919, %v967
    %969 = vmatmul.bf16.gmra.mxu0 %v150
    %v970 = vpop.f32.mrf.mxu0
    %v971 = vadd.f32 %v922, %v970
    %v972 = vpop.f32.mrf.mxu0
    %v973 = vadd.f32 %v924, %v972
    %974 = vmatmul.bf16.gmra.mxu0 %v157
    %v975 = vpop.f32.mrf.mxu0
    %v976 = vadd.f32 %v927, %v975
    %v977 = vpop.f32.mrf.mxu0
    %v978 = vadd.f32 %v929, %v977
    %979 = vmatmul.bf16.gmra.mxu0 %v164
    %v980 = vpop.f32.mrf.mxu0
    %v981 = vadd.f32 %v932, %v980
    %v982 = vpop.f32.mrf.mxu0
    %v983 = vadd.f32 %v934, %v982
    %984 = vmatmul.bf16.gmra.mxu0 %v171
    %v985 = vpop.f32.mrf.mxu0
    %v986 = vadd.f32 %v937, %v985
    %v987 = vpop.f32.mrf.mxu0
    %v988 = vadd.f32 %v939, %v987
    %989 = vmatmul.bf16.gmra.mxu0 %v178
    %v990 = vpop.f32.mrf.mxu0
    %v991 = vadd.f32 %v942, %v990
    %v992 = vpop.f32.mrf.mxu0
    %v993 = vadd.f32 %v944, %v992
    %994 = vmatmul.bf16.gmra.mxu0 %v185
    %v995 = vpop.f32.mrf.mxu0
    %v996 = vadd.f32 %v947, %v995
    %v997 = vpop.f32.mrf.mxu0
    %v998 = vadd.f32 %v949, %v997
    %999 = vmatmul.bf16.gmra.mxu0 %v192
    %v1000 = vpop.f32.mrf.mxu0
    %v1001 = vadd.f32 %v952, %v1000
    %v1002 = vpop.f32.mrf.mxu0
    %v1003 = vadd.f32 %v954, %v1002
    %1004 = vdwg.mxu0
    %1005 = vmatpush.bf16.msra.mxu0 %v666
    %1006 = vmatpush.bf16.msra.mxu0 %v664
    %1007 = vmatpush.bf16.msra.mxu0 %v662
    %1008 = vmatpush.bf16.msra.mxu0 %v660
    %1009 = vmatpush.bf16.msra.mxu0 %v658
    %1010 = vmatpush.bf16.msra.mxu0 %v656
    %1011 = vmatpush.bf16.msra.mxu0 %v654
    %1012 = vmatpush.bf16.msra.mxu0 %v652
    %1013 = vmatmul.bf16.gmra.mxu0 %v144
    %v1014 = vpop.f32.mrf.mxu0
    %v1015 = vadd.f32 %v966, %v1014
    %v1016 = vpop.f32.mrf.mxu0
    %v1017 = vadd.f32 %v968, %v1016
    %1018 = vmatmul.bf16.gmra.mxu0 %v151
    %v1019 = vpop.f32.mrf.mxu0
    %v1020 = vadd.f32 %v971, %v1019
    %v1021 = vpop.f32.mrf.mxu0
    %v1022 = vadd.f32 %v973, %v1021
    %1023 = vmatmul.bf16.gmra.mxu0 %v158
    %v1024 = vpop.f32.mrf.mxu0
    %v1025 = vadd.f32 %v976, %v1024
    %v1026 = vpop.f32.mrf.mxu0
    %v1027 = vadd.f32 %v978, %v1026
    %1028 = vmatmul.bf16.gmra.mxu0 %v165
    %v1029 = vpop.f32.mrf.mxu0
    %v1030 = vadd.f32 %v981, %v1029
    %v1031 = vpop.f32.mrf.mxu0
    %v1032 = vadd.f32 %v983, %v1031
    %1033 = vmatmul.bf16.gmra.mxu0 %v172
    %v1034 = vpop.f32.mrf.mxu0
    %v1035 = vadd.f32 %v986, %v1034
    %v1036 = vpop.f32.mrf.mxu0
    %v1037 = vadd.f32 %v988, %v1036
    %1038 = vmatmul.bf16.gmra.mxu0 %v179
    %v1039 = vpop.f32.mrf.mxu0
    %v1040 = vadd.f32 %v991, %v1039
    %v1041 = vpop.f32.mrf.mxu0
    %v1042 = vadd.f32 %v993, %v1041
    %1043 = vmatmul.bf16.gmra.mxu0 %v186
    %v1044 = vpop.f32.mrf.mxu0
    %v1045 = vadd.f32 %v996, %v1044
    %v1046 = vpop.f32.mrf.mxu0
    %v1047 = vadd.f32 %v998, %v1046
    %1048 = vmatmul.bf16.gmra.mxu0 %v193
    %v1049 = vpop.f32.mrf.mxu0
    %v1050 = vadd.f32 %v1001, %v1049
    %v1051 = vpop.f32.mrf.mxu0
    %v1052 = vadd.f32 %v1003, %v1051
    %1053 = vdwg.mxu0
    %1054 = vmatpush.bf16.msra.mxu0 %v682
    %1055 = vmatpush.bf16.msra.mxu0 %v680
    %1056 = vmatpush.bf16.msra.mxu0 %v678
    %1057 = vmatpush.bf16.msra.mxu0 %v676
    %1058 = vmatpush.bf16.msra.mxu0 %v674
    %1059 = vmatpush.bf16.msra.mxu0 %v672
    %1060 = vmatpush.bf16.msra.mxu0 %v670
    %1061 = vmatpush.bf16.msra.mxu0 %v668
    %1062 = vmatmul.bf16.gmra.mxu0 %v145
    %v1063 = vpop.f32.mrf.mxu0
    %v1064 = vadd.f32 %v1015, %v1063
    %v1065 = vpop.f32.mrf.mxu0
    %v1066 = vadd.f32 %v1017, %v1065
    %1067 = vmatmul.bf16.gmra.mxu0 %v152
    %v1068 = vpop.f32.mrf.mxu0
    %v1069 = vadd.f32 %v1020, %v1068
    %v1070 = vpop.f32.mrf.mxu0
    %v1071 = vadd.f32 %v1022, %v1070
    %1072 = vmatmul.bf16.gmra.mxu0 %v159
    %v1073 = vpop.f32.mrf.mxu0
    %v1074 = vadd.f32 %v1025, %v1073
    %v1075 = vpop.f32.mrf.mxu0
    %v1076 = vadd.f32 %v1027, %v1075
    %1077 = vmatmul.bf16.gmra.mxu0 %v166
    %v1078 = vpop.f32.mrf.mxu0
    %v1079 = vadd.f32 %v1030, %v1078
    %v1080 = vpop.f32.mrf.mxu0
    %v1081 = vadd.f32 %v1032, %v1080
    %1082 = vmatmul.bf16.gmra.mxu0 %v173
    %v1083 = vpop.f32.mrf.mxu0
    %v1084 = vadd.f32 %v1035, %v1083
    %v1085 = vpop.f32.mrf.mxu0
    %v1086 = vadd.f32 %v1037, %v1085
    %1087 = vmatmul.bf16.gmra.mxu0 %v180
    %v1088 = vpop.f32.mrf.mxu0
    %v1089 = vadd.f32 %v1040, %v1088
    %v1090 = vpop.f32.mrf.mxu0
    %v1091 = vadd.f32 %v1042, %v1090
    %1092 = vmatmul.bf16.gmra.mxu0 %v187
    %v1093 = vpop.f32.mrf.mxu0
    %v1094 = vadd.f32 %v1045, %v1093
    %v1095 = vpop.f32.mrf.mxu0
    %v1096 = vadd.f32 %v1047, %v1095
    %1097 = vmatmul.bf16.gmra.mxu0 %v194
    %v1098 = vpop.f32.mrf.mxu0
    %v1099 = vadd.f32 %v1050, %v1098
    %v1100 = vpop.f32.mrf.mxu0
    %v1101 = vadd.f32 %v1052, %v1100
    %1102 = vdwg.mxu0
    %1103 = vmatpush.bf16.msra.mxu0 0
    %1104 = vmatpush.bf16.msra.mxu0 0
    %1105 = vmatpush.bf16.msra.mxu0 0
    %1106 = vmatpush.bf16.msra.mxu0 0
    %1107 = vmatpush.bf16.msra.mxu0 0
    %1108 = vmatpush.bf16.msra.mxu0 0
    %1109 = vmatpush.bf16.msra.mxu0 0
    %1110 = vmatpush.bf16.msra.mxu0 %v684
    %1111 = vmatmul.bf16.gmra.mxu0 %v786
    %v1112 = vpop.f32.mrf.mxu0
    %v1113 = vadd.f32 %v1064, %v1112
    %v1114 = vpop.f32.mrf.mxu0
    %v1115 = vadd.f32 %v1066, %v1114
    %1116 = vmatmul.bf16.gmra.mxu0 %v789
    %v1117 = vpop.f32.mrf.mxu0
    %v1118 = vadd.f32 %v1069, %v1117
    %v1119 = vpop.f32.mrf.mxu0
    %v1120 = vadd.f32 %v1071, %v1119
    %1121 = vmatmul.bf16.gmra.mxu0 %v792
    %v1122 = vpop.f32.mrf.mxu0
    %v1123 = vadd.f32 %v1074, %v1122
    %v1124 = vpop.f32.mrf.mxu0
    %v1125 = vadd.f32 %v1076, %v1124
    %1126 = vmatmul.bf16.gmra.mxu0 %v795
    %v1127 = vpop.f32.mrf.mxu0
    %v1128 = vadd.f32 %v1079, %v1127
    %v1129 = vpop.f32.mrf.mxu0
    %v1130 = vadd.f32 %v1081, %v1129
    %1131 = vmatmul.bf16.gmra.mxu0 %v798
    %v1132 = vpop.f32.mrf.mxu0
    %v1133 = vadd.f32 %v1084, %v1132
    %v1134 = vpop.f32.mrf.mxu0
    %v1135 = vadd.f32 %v1086, %v1134
    %1136 = vmatmul.bf16.gmra.mxu0 %v801
    %v1137 = vpop.f32.mrf.mxu0
    %v1138 = vadd.f32 %v1089, %v1137
    %v1139 = vpop.f32.mrf.mxu0
    %v1140 = vadd.f32 %v1091, %v1139
    %1141 = vmatmul.bf16.gmra.mxu0 %v804
    %v1142 = vpop.f32.mrf.mxu0
    %v1143 = vadd.f32 %v1094, %v1142
    %v1144 = vpop.f32.mrf.mxu0
    %v1145 = vadd.f32 %v1096, %v1144
    %1146 = vmatmul.bf16.gmra.mxu0 %v807
    %v1147 = vpop.f32.mrf.mxu0
    %v1148 = vadd.f32 %v1099, %v1147
    %v1149 = vpop.f32.mrf.mxu0
    %v1150 = vadd.f32 %v1101, %v1149
    %1151 = vdwg.mxu0
    %1152 = vmatpush.bf16.msra.mxu0 %v603
    %1153 = vmatpush.bf16.msra.mxu0 %v601
    %1154 = vmatpush.bf16.msra.mxu0 %v599
    %1155 = vmatpush.bf16.msra.mxu0 %v597
    %1156 = vmatpush.bf16.msra.mxu0 %v595
    %1157 = vmatpush.bf16.msra.mxu0 %v593
    %1158 = vmatpush.bf16.msra.mxu0 %v591
    %1159 = vmatpush.bf16.msra.mxu0 %v589
    %1160 = vmatmul.bf16.gmra.mxu0 %v140
    %v1161 = vpop.f32.mrf.mxu0
    %v1162 = vadd.f32 0.0, %v1161
    %v1163 = vpop.f32.mrf.mxu0
    %v1164 = vadd.f32 0.0, %v1163
    %1165 = vmatmul.bf16.gmra.mxu0 %v147
    %v1166 = vpop.f32.mrf.mxu0
    %v1167 = vadd.f32 0.0, %v1166
    %v1168 = vpop.f32.mrf.mxu0
    %v1169 = vadd.f32 0.0, %v1168
    %1170 = vmatmul.bf16.gmra.mxu0 %v154
    %v1171 = vpop.f32.mrf.mxu0
    %v1172 = vadd.f32 0.0, %v1171
    %v1173 = vpop.f32.mrf.mxu0
    %v1174 = vadd.f32 0.0, %v1173
    %1175 = vmatmul.bf16.gmra.mxu0 %v161
    %v1176 = vpop.f32.mrf.mxu0
    %v1177 = vadd.f32 0.0, %v1176
    %v1178 = vpop.f32.mrf.mxu0
    %v1179 = vadd.f32 0.0, %v1178
    %1180 = vmatmul.bf16.gmra.mxu0 %v168
    %v1181 = vpop.f32.mrf.mxu0
    %v1182 = vadd.f32 0.0, %v1181
    %v1183 = vpop.f32.mrf.mxu0
    %v1184 = vadd.f32 0.0, %v1183
    %1185 = vmatmul.bf16.gmra.mxu0 %v175
    %v1186 = vpop.f32.mrf.mxu0
    %v1187 = vadd.f32 0.0, %v1186
    %v1188 = vpop.f32.mrf.mxu0
    %v1189 = vadd.f32 0.0, %v1188
    %1190 = vmatmul.bf16.gmra.mxu0 %v182
    %v1191 = vpop.f32.mrf.mxu0
    %v1192 = vadd.f32 0.0, %v1191
    %v1193 = vpop.f32.mrf.mxu0
    %v1194 = vadd.f32 0.0, %v1193
    %1195 = vmatmul.bf16.gmra.mxu0 %v189
    %v1196 = vpop.f32.mrf.mxu0
    %v1197 = vadd.f32 0.0, %v1196
    %v1198 = vpop.f32.mrf.mxu0
    %v1199 = vadd.f32 0.0, %v1198
    %1200 = vdwg.mxu0
    %1201 = vmatpush.bf16.msra.mxu0 %v619
    %1202 = vmatpush.bf16.msra.mxu0 %v617
    %1203 = vmatpush.bf16.msra.mxu0 %v615
    %1204 = vmatpush.bf16.msra.mxu0 %v613
    %1205 = vmatpush.bf16.msra.mxu0 %v611
    %1206 = vmatpush.bf16.msra.mxu0 %v609
    %1207 = vmatpush.bf16.msra.mxu0 %v607
    %1208 = vmatpush.bf16.msra.mxu0 %v605
    %1209 = vmatmul.bf16.gmra.mxu0 %v141
    %v1210 = vpop.f32.mrf.mxu0
    %v1211 = vadd.f32 %v1162, %v1210
    %v1212 = vpop.f32.mrf.mxu0
    %v1213 = vadd.f32 %v1164, %v1212
    %1214 = vmatmul.bf16.gmra.mxu0 %v148
    %v1215 = vpop.f32.mrf.mxu0
    %v1216 = vadd.f32 %v1167, %v1215
    %v1217 = vpop.f32.mrf.mxu0
    %v1218 = vadd.f32 %v1169, %v1217
    %1219 = vmatmul.bf16.gmra.mxu0 %v155
    %v1220 = vpop.f32.mrf.mxu0
    %v1221 = vadd.f32 %v1172, %v1220
    %v1222 = vpop.f32.mrf.mxu0
    %v1223 = vadd.f32 %v1174, %v1222
    %1224 = vmatmul.bf16.gmra.mxu0 %v162
    %v1225 = vpop.f32.mrf.mxu0
    %v1226 = vadd.f32 %v1177, %v1225
    %v1227 = vpop.f32.mrf.mxu0
    %v1228 = vadd.f32 %v1179, %v1227
    %1229 = vmatmul.bf16.gmra.mxu0 %v169
    %v1230 = vpop.f32.mrf.mxu0
    %v1231 = vadd.f32 %v1182, %v1230
    %v1232 = vpop.f32.mrf.mxu0
    %v1233 = vadd.f32 %v1184, %v1232
    %1234 = vmatmul.bf16.gmra.mxu0 %v176
    %v1235 = vpop.f32.mrf.mxu0
    %v1236 = vadd.f32 %v1187, %v1235
    %v1237 = vpop.f32.mrf.mxu0
    %v1238 = vadd.f32 %v1189, %v1237
    %1239 = vmatmul.bf16.gmra.mxu0 %v183
    %v1240 = vpop.f32.mrf.mxu0
    %v1241 = vadd.f32 %v1192, %v1240
    %v1242 = vpop.f32.mrf.mxu0
    %v1243 = vadd.f32 %v1194, %v1242
    %1244 = vmatmul.bf16.gmra.mxu0 %v190
    %v1245 = vpop.f32.mrf.mxu0
    %v1246 = vadd.f32 %v1197, %v1245
    %v1247 = vpop.f32.mrf.mxu0
    %v1248 = vadd.f32 %v1199, %v1247
    %1249 = vdwg.mxu0
    %1250 = vmatpush.bf16.msra.mxu0 %v635
    %1251 = vmatpush.bf16.msra.mxu0 %v633
    %1252 = vmatpush.bf16.msra.mxu0 %v631
    %1253 = vmatpush.bf16.msra.mxu0 %v629
    %1254 = vmatpush.bf16.msra.mxu0 %v627
    %1255 = vmatpush.bf16.msra.mxu0 %v625
    %1256 = vmatpush.bf16.msra.mxu0 %v623
    %1257 = vmatpush.bf16.msra.mxu0 %v621
    %1258 = vmatmul.bf16.gmra.mxu0 %v142
    %v1259 = vpop.f32.mrf.mxu0
    %v1260 = vadd.f32 %v1211, %v1259
    %v1261 = vpop.f32.mrf.mxu0
    %v1262 = vadd.f32 %v1213, %v1261
    %1263 = vmatmul.bf16.gmra.mxu0 %v149
    %v1264 = vpop.f32.mrf.mxu0
    %v1265 = vadd.f32 %v1216, %v1264
    %v1266 = vpop.f32.mrf.mxu0
    %v1267 = vadd.f32 %v1218, %v1266
    %1268 = vmatmul.bf16.gmra.mxu0 %v156
    %v1269 = vpop.f32.mrf.mxu0
    %v1270 = vadd.f32 %v1221, %v1269
    %v1271 = vpop.f32.mrf.mxu0
    %v1272 = vadd.f32 %v1223, %v1271
    %1273 = vmatmul.bf16.gmra.mxu0 %v163
    %v1274 = vpop.f32.mrf.mxu0
    %v1275 = vadd.f32 %v1226, %v1274
    %v1276 = vpop.f32.mrf.mxu0
    %v1277 = vadd.f32 %v1228, %v1276
    %1278 = vmatmul.bf16.gmra.mxu0 %v170
    %v1279 = vpop.f32.mrf.mxu0
    %v1280 = vadd.f32 %v1231, %v1279
    %v1281 = vpop.f32.mrf.mxu0
    %v1282 = vadd.f32 %v1233, %v1281
    %1283 = vmatmul.bf16.gmra.mxu0 %v177
    %v1284 = vpop.f32.mrf.mxu0
    %v1285 = vadd.f32 %v1236, %v1284
    %v1286 = vpop.f32.mrf.mxu0
    %v1287 = vadd.f32 %v1238, %v1286
    %1288 = vmatmul.bf16.gmra.mxu0 %v184
    %v1289 = vpop.f32.mrf.mxu0
    %v1290 = vadd.f32 %v1241, %v1289
    %v1291 = vpop.f32.mrf.mxu0
    %v1292 = vadd.f32 %v1243, %v1291
    %1293 = vmatmul.bf16.gmra.mxu0 %v191
    %v1294 = vpop.f32.mrf.mxu0
    %v1295 = vadd.f32 %v1246, %v1294
    %v1296 = vpop.f32.mrf.mxu0
    %v1297 = vadd.f32 %v1248, %v1296
    %1298 = vdwg.mxu0
    %1299 = vmatpush.bf16.msra.mxu0 %v651
    %1300 = vmatpush.bf16.msra.mxu0 %v649
    %1301 = vmatpush.bf16.msra.mxu0 %v647
    %1302 = vmatpush.bf16.msra.mxu0 %v645
    %1303 = vmatpush.bf16.msra.mxu0 %v643
    %1304 = vmatpush.bf16.msra.mxu0 %v641
    %1305 = vmatpush.bf16.msra.mxu0 %v639
    %1306 = vmatpush.bf16.msra.mxu0 %v637
    %1307 = vmatmul.bf16.gmra.mxu0 %v143
    %v1308 = vpop.f32.mrf.mxu0
    %v1309 = vadd.f32 %v1260, %v1308
    %v1310 = vpop.f32.mrf.mxu0
    %v1311 = vadd.f32 %v1262, %v1310
    %1312 = vmatmul.bf16.gmra.mxu0 %v150
    %v1313 = vpop.f32.mrf.mxu0
    %v1314 = vadd.f32 %v1265, %v1313
    %v1315 = vpop.f32.mrf.mxu0
    %v1316 = vadd.f32 %v1267, %v1315
    %1317 = vmatmul.bf16.gmra.mxu0 %v157
    %v1318 = vpop.f32.mrf.mxu0
    %v1319 = vadd.f32 %v1270, %v1318
    %v1320 = vpop.f32.mrf.mxu0
    %v1321 = vadd.f32 %v1272, %v1320
    %1322 = vmatmul.bf16.gmra.mxu0 %v164
    %v1323 = vpop.f32.mrf.mxu0
    %v1324 = vadd.f32 %v1275, %v1323
    %v1325 = vpop.f32.mrf.mxu0
    %v1326 = vadd.f32 %v1277, %v1325
    %1327 = vmatmul.bf16.gmra.mxu0 %v171
    %v1328 = vpop.f32.mrf.mxu0
    %v1329 = vadd.f32 %v1280, %v1328
    %v1330 = vpop.f32.mrf.mxu0
    %v1331 = vadd.f32 %v1282, %v1330
    %1332 = vmatmul.bf16.gmra.mxu0 %v178
    %v1333 = vpop.f32.mrf.mxu0
    %v1334 = vadd.f32 %v1285, %v1333
    %v1335 = vpop.f32.mrf.mxu0
    %v1336 = vadd.f32 %v1287, %v1335
    %1337 = vmatmul.bf16.gmra.mxu0 %v185
    %v1338 = vpop.f32.mrf.mxu0
    %v1339 = vadd.f32 %v1290, %v1338
    %v1340 = vpop.f32.mrf.mxu0
    %v1341 = vadd.f32 %v1292, %v1340
    %1342 = vmatmul.bf16.gmra.mxu0 %v192
    %v1343 = vpop.f32.mrf.mxu0
    %v1344 = vadd.f32 %v1295, %v1343
    %v1345 = vpop.f32.mrf.mxu0
    %v1346 = vadd.f32 %v1297, %v1345
    %1347 = vdwg.mxu0
    %1348 = vmatpush.bf16.msra.mxu0 %v667
    %1349 = vmatpush.bf16.msra.mxu0 %v665
    %1350 = vmatpush.bf16.msra.mxu0 %v663
    %1351 = vmatpush.bf16.msra.mxu0 %v661
    %1352 = vmatpush.bf16.msra.mxu0 %v659
    %1353 = vmatpush.bf16.msra.mxu0 %v657
    %1354 = vmatpush.bf16.msra.mxu0 %v655
    %1355 = vmatpush.bf16.msra.mxu0 %v653
    %1356 = vmatmul.bf16.gmra.mxu0 %v144
    %v1357 = vpop.f32.mrf.mxu0
    %v1358 = vadd.f32 %v1309, %v1357
    %v1359 = vpop.f32.mrf.mxu0
    %v1360 = vadd.f32 %v1311, %v1359
    %1361 = vmatmul.bf16.gmra.mxu0 %v151
    %v1362 = vpop.f32.mrf.mxu0
    %v1363 = vadd.f32 %v1314, %v1362
    %v1364 = vpop.f32.mrf.mxu0
    %v1365 = vadd.f32 %v1316, %v1364
    %1366 = vmatmul.bf16.gmra.mxu0 %v158
    %v1367 = vpop.f32.mrf.mxu0
    %v1368 = vadd.f32 %v1319, %v1367
    %v1369 = vpop.f32.mrf.mxu0
    %v1370 = vadd.f32 %v1321, %v1369
    %1371 = vmatmul.bf16.gmra.mxu0 %v165
    %v1372 = vpop.f32.mrf.mxu0
    %v1373 = vadd.f32 %v1324, %v1372
    %v1374 = vpop.f32.mrf.mxu0
    %v1375 = vadd.f32 %v1326, %v1374
    %1376 = vmatmul.bf16.gmra.mxu0 %v172
    %v1377 = vpop.f32.mrf.mxu0
    %v1378 = vadd.f32 %v1329, %v1377
    %v1379 = vpop.f32.mrf.mxu0
    %v1380 = vadd.f32 %v1331, %v1379
    %1381 = vmatmul.bf16.gmra.mxu0 %v179
    %v1382 = vpop.f32.mrf.mxu0
    %v1383 = vadd.f32 %v1334, %v1382
    %v1384 = vpop.f32.mrf.mxu0
    %v1385 = vadd.f32 %v1336, %v1384
    %1386 = vmatmul.bf16.gmra.mxu0 %v186
    %v1387 = vpop.f32.mrf.mxu0
    %v1388 = vadd.f32 %v1339, %v1387
    %v1389 = vpop.f32.mrf.mxu0
    %v1390 = vadd.f32 %v1341, %v1389
    %1391 = vmatmul.bf16.gmra.mxu0 %v193
    %v1392 = vpop.f32.mrf.mxu0
    %v1393 = vadd.f32 %v1344, %v1392
    %v1394 = vpop.f32.mrf.mxu0
    %v1395 = vadd.f32 %v1346, %v1394
    %1396 = vdwg.mxu0
    %1397 = vmatpush.bf16.msra.mxu0 %v683
    %1398 = vmatpush.bf16.msra.mxu0 %v681
    %1399 = vmatpush.bf16.msra.mxu0 %v679
    %1400 = vmatpush.bf16.msra.mxu0 %v677
    %1401 = vmatpush.bf16.msra.mxu0 %v675
    %1402 = vmatpush.bf16.msra.mxu0 %v673
    %1403 = vmatpush.bf16.msra.mxu0 %v671
    %1404 = vmatpush.bf16.msra.mxu0 %v669
    %1405 = vmatmul.bf16.gmra.mxu0 %v145
    %v1406 = vpop.f32.mrf.mxu0
    %v1407 = vadd.f32 %v1358, %v1406
    %v1408 = vpop.f32.mrf.mxu0
    %v1409 = vadd.f32 %v1360, %v1408
    %1410 = vmatmul.bf16.gmra.mxu0 %v152
    %v1411 = vpop.f32.mrf.mxu0
    %v1412 = vadd.f32 %v1363, %v1411
    %v1413 = vpop.f32.mrf.mxu0
    %v1414 = vadd.f32 %v1365, %v1413
    %1415 = vmatmul.bf16.gmra.mxu0 %v159
    %v1416 = vpop.f32.mrf.mxu0
    %v1417 = vadd.f32 %v1368, %v1416
    %v1418 = vpop.f32.mrf.mxu0
    %v1419 = vadd.f32 %v1370, %v1418
    %1420 = vmatmul.bf16.gmra.mxu0 %v166
    %v1421 = vpop.f32.mrf.mxu0
    %v1422 = vadd.f32 %v1373, %v1421
    %v1423 = vpop.f32.mrf.mxu0
    %v1424 = vadd.f32 %v1375, %v1423
    %1425 = vmatmul.bf16.gmra.mxu0 %v173
    %v1426 = vpop.f32.mrf.mxu0
    %v1427 = vadd.f32 %v1378, %v1426
    %v1428 = vpop.f32.mrf.mxu0
    %v1429 = vadd.f32 %v1380, %v1428
    %1430 = vmatmul.bf16.gmra.mxu0 %v180
    %v1431 = vpop.f32.mrf.mxu0
    %v1432 = vadd.f32 %v1383, %v1431
    %v1433 = vpop.f32.mrf.mxu0
    %v1434 = vadd.f32 %v1385, %v1433
    %1435 = vmatmul.bf16.gmra.mxu0 %v187
    %v1436 = vpop.f32.mrf.mxu0
    %v1437 = vadd.f32 %v1388, %v1436
    %v1438 = vpop.f32.mrf.mxu0
    %v1439 = vadd.f32 %v1390, %v1438
    %1440 = vmatmul.bf16.gmra.mxu0 %v194
    %v1441 = vpop.f32.mrf.mxu0
    %v1442 = vadd.f32 %v1393, %v1441
    %v1443 = vpop.f32.mrf.mxu0
    %v1444 = vadd.f32 %v1395, %v1443
    %1445 = vdwg.mxu0
    %1446 = vmatpush.bf16.msra.mxu0 0
    %1447 = vmatpush.bf16.msra.mxu0 0
    %1448 = vmatpush.bf16.msra.mxu0 0
    %1449 = vmatpush.bf16.msra.mxu0 0
    %1450 = vmatpush.bf16.msra.mxu0 0
    %1451 = vmatpush.bf16.msra.mxu0 0
    %1452 = vmatpush.bf16.msra.mxu0 0
    %1453 = vmatpush.bf16.msra.mxu0 %v685
    %1454 = vmatmul.bf16.gmra.mxu0 %v786
    %v1455 = vpop.f32.mrf.mxu0
    %v1456 = vadd.f32 %v1407, %v1455
    %v1457 = vpop.f32.mrf.mxu0
    %v1458 = vadd.f32 %v1409, %v1457
    %1459 = vmatmul.bf16.gmra.mxu0 %v789
    %v1460 = vpop.f32.mrf.mxu0
    %v1461 = vadd.f32 %v1412, %v1460
    %v1462 = vpop.f32.mrf.mxu0
    %v1463 = vadd.f32 %v1414, %v1462
    %1464 = vmatmul.bf16.gmra.mxu0 %v792
    %v1465 = vpop.f32.mrf.mxu0
    %v1466 = vadd.f32 %v1417, %v1465
    %v1467 = vpop.f32.mrf.mxu0
    %v1468 = vadd.f32 %v1419, %v1467
    %1469 = vmatmul.bf16.gmra.mxu0 %v795
    %v1470 = vpop.f32.mrf.mxu0
    %v1471 = vadd.f32 %v1422, %v1470
    %v1472 = vpop.f32.mrf.mxu0
    %v1473 = vadd.f32 %v1424, %v1472
    %1474 = vmatmul.bf16.gmra.mxu0 %v798
    %v1475 = vpop.f32.mrf.mxu0
    %v1476 = vadd.f32 %v1427, %v1475
    %v1477 = vpop.f32.mrf.mxu0
    %v1478 = vadd.f32 %v1429, %v1477
    %1479 = vmatmul.bf16.gmra.mxu0 %v801
    %v1480 = vpop.f32.mrf.mxu0
    %v1481 = vadd.f32 %v1432, %v1480
    %v1482 = vpop.f32.mrf.mxu0
    %v1483 = vadd.f32 %v1434, %v1482
    %1484 = vmatmul.bf16.gmra.mxu0 %v804
    %v1485 = vpop.f32.mrf.mxu0
    %v1486 = vadd.f32 %v1437, %v1485
    %v1487 = vpop.f32.mrf.mxu0
    %v1488 = vadd.f32 %v1439, %v1487
    %1489 = vmatmul.bf16.gmra.mxu0 %v807
    %v1490 = vpop.f32.mrf.mxu0
    %v1491 = vadd.f32 %v1442, %v1490
    %v1492 = vpop.f32.mrf.mxu0
    %v1493 = vadd.f32 %v1444, %v1492
    %1494 = vdwg.mxu0
    %v1495 = vadd.f32 %v1113, %v1115
    %v1496 = vadd.f32 %v1495, %v1118
    %v1497 = vadd.f32 %v1496, %v1120
    %v1498 = vadd.f32 %v1497, %v1123
    %v1499 = vadd.f32 %v1498, %v1125
    %v1500 = vadd.f32 %v1499, %v1128
    %v1501 = vadd.f32 %v1500, %v1130
    %v1502 = vadd.f32 %v1501, %v1133
    %v1503 = vadd.f32 %v1502, %v1135
    %v1504 = vadd.f32 %v1503, %v1138
    %v1505 = vadd.f32 %v1504, %v1140
    %v1506 = vadd.f32 %v1505, %v1143
    %v1507 = vadd.f32 %v1506, %v1145
    %v1508 = vadd.f32 %v1507, %v1148
    %v1509 = vadd.f32 %v1508, %v1150
    %v1510 = vrot.slane %v1509, 4
    %v1511 = vadd.f32 %v1509, %v1510
    %v1512 = vrot.slane %v1511, 2
    %v1513 = vadd.f32 %v1511, %v1512
    %v1514 = vrot.slane %v1513, 1
    %v1515 = vadd.f32 %v1513, %v1514
    %v1516 = vadd.f32 %v1456, %v1458
    %v1517 = vadd.f32 %v1516, %v1461
    %v1518 = vadd.f32 %v1517, %v1463
    %v1519 = vadd.f32 %v1518, %v1466
    %v1520 = vadd.f32 %v1519, %v1468
    %v1521 = vadd.f32 %v1520, %v1471
    %v1522 = vadd.f32 %v1521, %v1473
    %v1523 = vadd.f32 %v1522, %v1476
    %v1524 = vadd.f32 %v1523, %v1478
    %v1525 = vadd.f32 %v1524, %v1481
    %v1526 = vadd.f32 %v1525, %v1483
    %v1527 = vadd.f32 %v1526, %v1486
    %v1528 = vadd.f32 %v1527, %v1488
    %v1529 = vadd.f32 %v1528, %v1491
    %v1530 = vadd.f32 %v1529, %v1493
    %v1531 = vrot.slane %v1530, 4
    %v1532 = vadd.f32 %v1530, %v1531
    %v1533 = vrot.slane %v1532, 2
    %v1534 = vadd.f32 %v1532, %v1533
    %v1535 = vrot.slane %v1534, 1
    %v1536 = vadd.f32 %v1534, %v1535
    %v1537 = vmul.f32 %v1515, 0.0078125
    %v1538 = vmul.f32 %v1536, 0.0078125
    %v1539 = vmul.f32 %v1113, %v1113
    %v1540 = vmul.f32 %v1456, %v1456
    %v1541 = vmul.f32 %v1115, %v1115
    %v1542 = vmul.f32 %v1458, %v1458
    %v1543 = vmul.f32 %v1118, %v1118
    %v1544 = vmul.f32 %v1461, %v1461
    %v1545 = vmul.f32 %v1120, %v1120
    %v1546 = vmul.f32 %v1463, %v1463
    %v1547 = vmul.f32 %v1123, %v1123
    %v1548 = vmul.f32 %v1466, %v1466
    %v1549 = vmul.f32 %v1125, %v1125
    %v1550 = vmul.f32 %v1468, %v1468
    %v1551 = vmul.f32 %v1128, %v1128
    %v1552 = vmul.f32 %v1471, %v1471
    %v1553 = vmul.f32 %v1130, %v1130
    %v1554 = vmul.f32 %v1473, %v1473
    %v1555 = vmul.f32 %v1133, %v1133
    %v1556 = vmul.f32 %v1476, %v1476
    %v1557 = vmul.f32 %v1135, %v1135
    %v1558 = vmul.f32 %v1478, %v1478
    %v1559 = vmul.f32 %v1138, %v1138
    %v1560 = vmul.f32 %v1481, %v1481
    %v1561 = vmul.f32 %v1140, %v1140
    %v1562 = vmul.f32 %v1483, %v1483
    %v1563 = vmul.f32 %v1143, %v1143
    %v1564 = vmul.f32 %v1486, %v1486
    %v1565 = vmul.f32 %v1145, %v1145
    %v1566 = vmul.f32 %v1488, %v1488
    %v1567 = vmul.f32 %v1148, %v1148
    %v1568 = vmul.f32 %v1491, %v1491
    %v1569 = vmul.f32 %v1150, %v1150
    %v1570 = vmul.f32 %v1493, %v1493
    %v1571 = vadd.f32 %v1539, %v1541
    %v1572 = vadd.f32 %v1571, %v1543
    %v1573 = vadd.f32 %v1572, %v1545
    %v1574 = vadd.f32 %v1573, %v1547
    %v1575 = vadd.f32 %v1574, %v1549
    %v1576 = vadd.f32 %v1575, %v1551
    %v1577 = vadd.f32 %v1576, %v1553
    %v1578 = vadd.f32 %v1577, %v1555
    %v1579 = vadd.f32 %v1578, %v1557
    %v1580 = vadd.f32 %v1579, %v1559
    %v1581 = vadd.f32 %v1580, %v1561
    %v1582 = vadd.f32 %v1581, %v1563
    %v1583 = vadd.f32 %v1582, %v1565
    %v1584 = vadd.f32 %v1583, %v1567
    %v1585 = vadd.f32 %v1584, %v1569
    %v1586 = vrot.slane %v1585, 4
    %v1587 = vadd.f32 %v1585, %v1586
    %v1588 = vrot.slane %v1587, 2
    %v1589 = vadd.f32 %v1587, %v1588
    %v1590 = vrot.slane %v1589, 1
    %v1591 = vadd.f32 %v1589, %v1590
    %v1592 = vadd.f32 %v1540, %v1542
    %v1593 = vadd.f32 %v1592, %v1544
    %v1594 = vadd.f32 %v1593, %v1546
    %v1595 = vadd.f32 %v1594, %v1548
    %v1596 = vadd.f32 %v1595, %v1550
    %v1597 = vadd.f32 %v1596, %v1552
    %v1598 = vadd.f32 %v1597, %v1554
    %v1599 = vadd.f32 %v1598, %v1556
    %v1600 = vadd.f32 %v1599, %v1558
    %v1601 = vadd.f32 %v1600, %v1560
    %v1602 = vadd.f32 %v1601, %v1562
    %v1603 = vadd.f32 %v1602, %v1564
    %v1604 = vadd.f32 %v1603, %v1566
    %v1605 = vadd.f32 %v1604, %v1568
    %v1606 = vadd.f32 %v1605, %v1570
    %v1607 = vrot.slane %v1606, 4
    %v1608 = vadd.f32 %v1606, %v1607
    %v1609 = vrot.slane %v1608, 2
    %v1610 = vadd.f32 %v1608, %v1609
    %v1611 = vrot.slane %v1610, 1
    %v1612 = vadd.f32 %v1610, %v1611
    %v1613 = vmul.f32 %v1591, 0.0078125
    %v1614 = vmul.f32 %v1612, 0.0078125
    %v1615 = vmul.f32 %v1537, %v1537
    %v1616 = vmul.f32 %v1538, %v1538
    %v1617 = vsub.f32 %v1613, %v1615
    %v1618 = vsub.f32 %v1614, %v1616
    %v1619 = vmax.f32 %v1617, 0.0
    %v1620 = vmax.f32 %v1618, 0.0
    %v1621 = vadd.f32 %v1619, 1e-05
    %v1622 = vadd.f32 %v1620, 1e-05
    %v1623 = vrsqrt.pop %v1621
    %v1624 = vmul.f32 %v1623, %v1621
    %v1625 = vmul.f32 %v1624, %v1623
    %v1626 = vmul.f32 0.5, %v1625
    %v1627 = vsub.f32 1.5, %v1626
    %v1628 = vmul.f32 %v1623, %v1627
    %vm1629 = vweird.f32 %v1621
    %vm1630 = vweird.f32 %v1623
    %vm1631 = vmor %vm1629, %vm1630
    %v1632 = vsel %vm1631, %v1623, %v1628
    %v1633 = vrsqrt.pop %v1622
    %v1634 = vmul.f32 %v1633, %v1622
    %v1635 = vmul.f32 %v1634, %v1633
    %v1636 = vmul.f32 0.5, %v1635
    %v1637 = vsub.f32 1.5, %v1636
    %v1638 = vmul.f32 %v1633, %v1637
    %vm1639 = vweird.f32 %v1622
    %vm1640 = vweird.f32 %v1633
    %vm1641 = vmor %vm1639, %vm1640
    %v1642 = vsel %vm1641, %v1633, %v1638
    %v1645 = vrot.slane %v1642, 4
    %vm1646 = vcmask 1043456
    %v1647 = vsel %vm1646, %v1632, %v1645
    %v1649 = vmul.f32 %v25, %v1647
    %v1651 = vperm.slane %v1649, 0
    %v1652 = vperm.slane %v1649, 4
    %v1655 = vmul.f32 %v1537, %v1651
    %v1656 = vmul.f32 %v1538, %v1652
    %v1659 = vrot.slane %v1656, 4
    %v1660 = vsel %vm1646, %v1655, %v1659
    %v1661 = vrot.slane %v1660, 7
    %v1663 = vsub.f32 %v25, %v1661
    %v1664 = vperm.slane %v1651, 0
    %v1665 = vperm.slane %v1652, 0
    %v1666 = vmul.f32 %v1113, %v1664
    %v1667 = vmul.f32 %v1456, %v1665
    %v1668 = vmul.f32 %v1115, %v1664
    %v1669 = vmul.f32 %v1458, %v1665
    %v1670 = vmul.f32 %v1118, %v1664
    %v1671 = vmul.f32 %v1461, %v1665
    %v1672 = vmul.f32 %v1120, %v1664
    %v1673 = vmul.f32 %v1463, %v1665
    %v1674 = vmul.f32 %v1123, %v1664
    %v1675 = vmul.f32 %v1466, %v1665
    %v1676 = vmul.f32 %v1125, %v1664
    %v1677 = vmul.f32 %v1468, %v1665
    %v1678 = vmul.f32 %v1128, %v1664
    %v1679 = vmul.f32 %v1471, %v1665
    %v1680 = vmul.f32 %v1130, %v1664
    %v1681 = vmul.f32 %v1473, %v1665
    %v1682 = vmul.f32 %v1133, %v1664
    %v1683 = vmul.f32 %v1476, %v1665
    %v1684 = vmul.f32 %v1135, %v1664
    %v1685 = vmul.f32 %v1478, %v1665
    %v1686 = vmul.f32 %v1138, %v1664
    %v1687 = vmul.f32 %v1481, %v1665
    %v1688 = vmul.f32 %v1140, %v1664
    %v1689 = vmul.f32 %v1483, %v1665
    %v1690 = vmul.f32 %v1143, %v1664
    %v1691 = vmul.f32 %v1486, %v1665
    %v1692 = vmul.f32 %v1145, %v1664
    %v1693 = vmul.f32 %v1488, %v1665
    %v1694 = vmul.f32 %v1148, %v1664
    %v1695 = vmul.f32 %v1491, %v1665
    %v1696 = vmul.f32 %v1150, %v1664
    %v1697 = vmul.f32 %v1493, %v1665
    %v1699 = vperm.slane %v1663, 1
    %v1700 = vperm.slane %v1663, 5
    %v1703 = vperm.slane %v1699, 1
    %v1704 = vperm.slane %v1700, 1
    %v1705 = vadd.f32 %v1666, %v1703
    %v1706 = vadd.f32 %v1667, %v1704
    %v1707 = vadd.f32 %v1668, %v1703
    %v1708 = vadd.f32 %v1669, %v1704
    %v1709 = vadd.f32 %v1670, %v1703
    %v1710 = vadd.f32 %v1671, %v1704
    %v1711 = vadd.f32 %v1672, %v1703
    %v1712 = vadd.f32 %v1673, %v1704
    %v1713 = vadd.f32 %v1674, %v1703
    %v1714 = vadd.f32 %v1675, %v1704
    %v1715 = vadd.f32 %v1676, %v1703
    %v1716 = vadd.f32 %v1677, %v1704
    %v1717 = vadd.f32 %v1678, %v1703
    %v1718 = vadd.f32 %v1679, %v1704
    %v1719 = vadd.f32 %v1680, %v1703
    %v1720 = vadd.f32 %v1681, %v1704
    %v1721 = vadd.f32 %v1682, %v1703
    %v1722 = vadd.f32 %v1683, %v1704
    %v1723 = vadd.f32 %v1684, %v1703
    %v1724 = vadd.f32 %v1685, %v1704
    %v1725 = vadd.f32 %v1686, %v1703
    %v1726 = vadd.f32 %v1687, %v1704
    %v1727 = vadd.f32 %v1688, %v1703
    %v1728 = vadd.f32 %v1689, %v1704
    %v1729 = vadd.f32 %v1690, %v1703
    %v1730 = vadd.f32 %v1691, %v1704
    %v1731 = vadd.f32 %v1692, %v1703
    %v1732 = vadd.f32 %v1693, %v1704
    %v1733 = vadd.f32 %v1694, %v1703
    %v1734 = vadd.f32 %v1695, %v1704
    %v1735 = vadd.f32 %v1696, %v1703
    %v1736 = vadd.f32 %v1697, %v1704
    %v1737 = vmax.f32 %v1705, 0.0
    %v1738 = vmax.f32 %v1706, 0.0
    %v1739 = vmax.f32 %v1707, 0.0
    %v1740 = vmax.f32 %v1708, 0.0
    %v1741 = vmax.f32 %v1709, 0.0
    %v1742 = vmax.f32 %v1710, 0.0
    %v1743 = vmax.f32 %v1711, 0.0
    %v1744 = vmax.f32 %v1712, 0.0
    %v1745 = vmax.f32 %v1713, 0.0
    %v1746 = vmax.f32 %v1714, 0.0
    %v1747 = vmax.f32 %v1715, 0.0
    %v1748 = vmax.f32 %v1716, 0.0
    %v1749 = vmax.f32 %v1717, 0.0
    %v1750 = vmax.f32 %v1718, 0.0
    %v1751 = vmax.f32 %v1719, 0.0
    %v1752 = vmax.f32 %v1720, 0.0
    %v1753 = vmax.f32 %v1721, 0.0
    %v1754 = vmax.f32 %v1722, 0.0
    %v1755 = vmax.f32 %v1723, 0.0
    %v1756 = vmax.f32 %v1724, 0.0
    %v1757 = vmax.f32 %v1725, 0.0
    %v1758 = vmax.f32 %v1726, 0.0
    %v1759 = vmax.f32 %v1727, 0.0
    %v1760 = vmax.f32 %v1728, 0.0
    %v1761 = vmax.f32 %v1729, 0.0
    %v1762 = vmax.f32 %v1730, 0.0
    %v1763 = vmax.f32 %v1731, 0.0
    %v1764 = vmax.f32 %v1732, 0.0
    %v1765 = vmax.f32 %v1733, 0.0
    %v1766 = vmax.f32 %v1734, 0.0
    %v1767 = vmax.f32 %v1735, 0.0
    %v1768 = vmax.f32 %v1736, 0.0
    %v1769 = vpack.c.bf16 %v1739, %v1737
    %v1770 = vpack.c.bf16 %v1740, %v1738
    %v1771 = vpack.c.bf16 %v1743, %v1741
    %v1772 = vpack.c.bf16 %v1744, %v1742
    %v1773 = vpack.c.bf16 %v1747, %v1745
    %v1774 = vpack.c.bf16 %v1748, %v1746
    %v1775 = vpack.c.bf16 %v1751, %v1749
    %v1776 = vpack.c.bf16 %v1752, %v1750
    %v1777 = vpack.c.bf16 %v1755, %v1753
    %v1778 = vpack.c.bf16 %v1756, %v1754
    %v1779 = vpack.c.bf16 %v1759, %v1757
    %v1780 = vpack.c.bf16 %v1760, %v1758
    %v1781 = vpack.c.bf16 %v1763, %v1761
    %v1782 = vpack.c.bf16 %v1764, %v1762
    %v1783 = vpack.c.bf16 %v1767, %v1765
    %v1784 = vpack.c.bf16 %v1768, %v1766
    %v1785 = vld [vmem:[%s2] sm:$0xf]
    %v1786 = vld [vmem:[%s2 + $0x4] sm:$0xf]
    %v1787 = vld [vmem:[%s2 + $0x8] sm:$0xf]
    %v1788 = vld [vmem:[%s2 + $0xc] sm:$0xf]
    %v1789 = vld [vmem:[%s2 + $0x10] sm:$0xf]
    %v1790 = vld [vmem:[%s2 + $0x14] sm:$0xf]
    %v1791 = vld [vmem:[%s2 + $0x18] sm:$0xf]
    %v1792 = vld [vmem:[%s2 + $0x1c] sm:$0xf]
    %v1793 = vld [vmem:[%s2 + $0x20] sm:$0xf]
    %v1794 = vld [vmem:[%s2 + $0x24] sm:$0xf]
    %v1795 = vld [vmem:[%s2 + $0x28] sm:$0xf]
    %v1796 = vld [vmem:[%s2 + $0x2c] sm:$0xf]
    %v1797 = vld [vmem:[%s2 + $0x30] sm:$0xf]
    %v1798 = vld [vmem:[%s2 + $0x34] sm:$0xf]
    %v1799 = vld [vmem:[%s2 + $0x38] sm:$0xf]
    %v1800 = vld [vmem:[%s2 + $0x3c] sm:$0xf]
    %v1801 = vld [vmem:[%s2 + $0x40] sm:$0xf]
    %v1802 = vld [vmem:[%s2 + $0x44] sm:$0xf]
    %v1803 = vld [vmem:[%s2 + $0x48] sm:$0xf]
    %v1804 = vld [vmem:[%s2 + $0x4c] sm:$0xf]
    %v1805 = vld [vmem:[%s2 + $0x50] sm:$0xf]
    %v1806 = vld [vmem:[%s2 + $0x54] sm:$0xf]
    %v1807 = vld [vmem:[%s2 + $0x58] sm:$0xf]
    %v1808 = vld [vmem:[%s2 + $0x5c] sm:$0xf]
    %v1809 = vld [vmem:[%s2 + $0x60] sm:$0xf]
    %v1810 = vld [vmem:[%s2 + $0x64] sm:$0xf]
    %v1811 = vld [vmem:[%s2 + $0x68] sm:$0xf]
    %v1812 = vld [vmem:[%s2 + $0x6c] sm:$0xf]
    %v1813 = vld [vmem:[%s2 + $0x70] sm:$0xf]
    %v1814 = vld [vmem:[%s2 + $0x74] sm:$0xf]
    %v1815 = vld [vmem:[%s2 + $0x78] sm:$0xf]
    %v1816 = vld [vmem:[%s2 + $0x7c] sm:$0xf]
    %v1849 = vunpack.c.l.b16 %v1785
    %v1850 = vunpack.c.l.b16 %v1786
    %v1851 = vunpack.c.l.b16 %v1787
    %v1852 = vunpack.c.l.b16 %v1788
    %v1853 = vunpack.c.l.b16 %v1789
    %v1854 = vunpack.c.l.b16 %v1790
    %v1855 = vunpack.c.l.b16 %v1791
    %v1856 = vunpack.c.l.b16 %v1792
    %v1857 = vunpack.c.l.b16 %v1793
    %v1858 = vunpack.c.l.b16 %v1794
    %v1859 = vunpack.c.l.b16 %v1795
    %v1860 = vunpack.c.l.b16 %v1796
    %v1861 = vunpack.c.l.b16 %v1797
    %v1862 = vunpack.c.l.b16 %v1798
    %v1863 = vunpack.c.l.b16 %v1799
    %v1864 = vunpack.c.l.b16 %v1800
    %v1865 = vunpack.c.l.b16 %v1801
    %v1866 = vunpack.c.l.b16 %v1802
    %v1867 = vunpack.c.l.b16 %v1803
    %v1868 = vunpack.c.l.b16 %v1804
    %v1869 = vunpack.c.l.b16 %v1805
    %v1870 = vunpack.c.l.b16 %v1806
    %v1871 = vunpack.c.l.b16 %v1807
    %v1872 = vunpack.c.l.b16 %v1808
    %v1873 = vunpack.c.l.b16 %v1809
    %v1874 = vunpack.c.l.b16 %v1810
    %v1875 = vunpack.c.l.b16 %v1811
    %v1876 = vunpack.c.l.b16 %v1812
    %v1877 = vunpack.c.l.b16 %v1813
    %v1878 = vunpack.c.l.b16 %v1814
    %v1879 = vunpack.c.l.b16 %v1815
    %v1880 = vunpack.c.l.b16 %v1816
    %v1881 = vpack.c.b16 %v1850, %v1849
    %v1882 = vpack.c.b16 %v1852, %v1851
    %v1883 = vpack.c.b16 %v1854, %v1853
    %v1884 = vpack.c.b16 %v1856, %v1855
    %v1885 = vpack.c.b16 %v1858, %v1857
    %v1886 = vpack.c.b16 %v1860, %v1859
    %v1887 = vpack.c.b16 %v1862, %v1861
    %v1888 = vpack.c.b16 %v1864, %v1863
    %v1889 = vpack.c.b16 %v1866, %v1865
    %v1890 = vpack.c.b16 %v1868, %v1867
    %v1891 = vpack.c.b16 %v1870, %v1869
    %v1892 = vpack.c.b16 %v1872, %v1871
    %v1893 = vpack.c.b16 %v1874, %v1873
    %v1894 = vpack.c.b16 %v1876, %v1875
    %v1895 = vpack.c.b16 %v1878, %v1877
    %v1896 = vpack.c.b16 %v1880, %v1879
    %1913 = vmatpush.bf16.msra.mxu0 %v1888
    %1914 = vmatpush.bf16.msra.mxu0 %v1887
    %1915 = vmatpush.bf16.msra.mxu0 %v1886
    %1916 = vmatpush.bf16.msra.mxu0 %v1885
    %1917 = vmatpush.bf16.msra.mxu0 %v1884
    %1918 = vmatpush.bf16.msra.mxu0 %v1883
    %1919 = vmatpush.bf16.msra.mxu0 %v1882
    %1920 = vmatpush.bf16.msra.mxu0 %v1881
    %1921 = vmatmul.bf16.gmra.mxu0 %v1769
    %v1922 = vpop.f32.mrf.mxu0
    %v1923 = vadd.f32 0.0, %v1922
    %v1924 = vpop.f32.mrf.mxu0
    %v1925 = vadd.f32 0.0, %v1924
    %1926 = vmatmul.bf16.gmra.mxu0 %v1771
    %v1927 = vpop.f32.mrf.mxu0
    %v1928 = vadd.f32 0.0, %v1927
    %v1929 = vpop.f32.mrf.mxu0
    %v1930 = vadd.f32 0.0, %v1929
    %1931 = vmatmul.bf16.gmra.mxu0 %v1773
    %v1932 = vpop.f32.mrf.mxu0
    %v1933 = vadd.f32 0.0, %v1932
    %v1934 = vpop.f32.mrf.mxu0
    %v1935 = vadd.f32 0.0, %v1934
    %1936 = vmatmul.bf16.gmra.mxu0 %v1775
    %v1937 = vpop.f32.mrf.mxu0
    %v1938 = vadd.f32 0.0, %v1937
    %v1939 = vpop.f32.mrf.mxu0
    %v1940 = vadd.f32 0.0, %v1939
    %1941 = vmatmul.bf16.gmra.mxu0 %v1777
    %v1942 = vpop.f32.mrf.mxu0
    %v1943 = vadd.f32 0.0, %v1942
    %v1944 = vpop.f32.mrf.mxu0
    %v1945 = vadd.f32 0.0, %v1944
    %1946 = vmatmul.bf16.gmra.mxu0 %v1779
    %v1947 = vpop.f32.mrf.mxu0
    %v1948 = vadd.f32 0.0, %v1947
    %v1949 = vpop.f32.mrf.mxu0
    %v1950 = vadd.f32 0.0, %v1949
    %1951 = vmatmul.bf16.gmra.mxu0 %v1781
    %v1952 = vpop.f32.mrf.mxu0
    %v1953 = vadd.f32 0.0, %v1952
    %v1954 = vpop.f32.mrf.mxu0
    %v1955 = vadd.f32 0.0, %v1954
    %1956 = vmatmul.bf16.gmra.mxu0 %v1783
    %v1957 = vpop.f32.mrf.mxu0
    %v1958 = vadd.f32 0.0, %v1957
    %v1959 = vpop.f32.mrf.mxu0
    %v1960 = vadd.f32 0.0, %v1959
    %1961 = vdwg.mxu0
    %1962 = vmatpush.bf16.msra.mxu0 %v1896
    %1963 = vmatpush.bf16.msra.mxu0 %v1895
    %1964 = vmatpush.bf16.msra.mxu0 %v1894
    %1965 = vmatpush.bf16.msra.mxu0 %v1893
    %1966 = vmatpush.bf16.msra.mxu0 %v1892
    %1967 = vmatpush.bf16.msra.mxu0 %v1891
    %1968 = vmatpush.bf16.msra.mxu0 %v1890
    %1969 = vmatpush.bf16.msra.mxu0 %v1889
    %1970 = vmatmul.bf16.gmra.mxu0 %v1770
    %v1971 = vpop.f32.mrf.mxu0
    %v1972 = vadd.f32 %v1923, %v1971
    %v1973 = vpop.f32.mrf.mxu0
    %v1974 = vadd.f32 %v1925, %v1973
    %1975 = vmatmul.bf16.gmra.mxu0 %v1772
    %v1976 = vpop.f32.mrf.mxu0
    %v1977 = vadd.f32 %v1928, %v1976
    %v1978 = vpop.f32.mrf.mxu0
    %v1979 = vadd.f32 %v1930, %v1978
    %1980 = vmatmul.bf16.gmra.mxu0 %v1774
    %v1981 = vpop.f32.mrf.mxu0
    %v1982 = vadd.f32 %v1933, %v1981
    %v1983 = vpop.f32.mrf.mxu0
    %v1984 = vadd.f32 %v1935, %v1983
    %1985 = vmatmul.bf16.gmra.mxu0 %v1776
    %v1986 = vpop.f32.mrf.mxu0
    %v1987 = vadd.f32 %v1938, %v1986
    %v1988 = vpop.f32.mrf.mxu0
    %v1989 = vadd.f32 %v1940, %v1988
    %1990 = vmatmul.bf16.gmra.mxu0 %v1778
    %v1991 = vpop.f32.mrf.mxu0
    %v1992 = vadd.f32 %v1943, %v1991
    %v1993 = vpop.f32.mrf.mxu0
    %v1994 = vadd.f32 %v1945, %v1993
    %1995 = vmatmul.bf16.gmra.mxu0 %v1780
    %v1996 = vpop.f32.mrf.mxu0
    %v1997 = vadd.f32 %v1948, %v1996
    %v1998 = vpop.f32.mrf.mxu0
    %v1999 = vadd.f32 %v1950, %v1998
    %2000 = vmatmul.bf16.gmra.mxu0 %v1782
    %v2001 = vpop.f32.mrf.mxu0
    %v2002 = vadd.f32 %v1953, %v2001
    %v2003 = vpop.f32.mrf.mxu0
    %v2004 = vadd.f32 %v1955, %v2003
    %2005 = vmatmul.bf16.gmra.mxu0 %v1784
    %v2006 = vpop.f32.mrf.mxu0
    %v2007 = vadd.f32 %v1958, %v2006
    %v2008 = vpop.f32.mrf.mxu0
    %v2009 = vadd.f32 %v1960, %v2008
    %2010 = vdwg.mxu0
    %vm2011 = vcmask 523264
    %v2012 = vsel %vm2011, %v1972, 0.0
    %v2013 = vsel %vm2011, %v1974, 0.0
    %v2014 = vadd.f32 %v2012, %v2013
    %v2015 = vsel %vm2011, %v1977, 0.0
    %v2016 = vadd.f32 %v2014, %v2015
    %v2017 = vsel %vm2011, %v1979, 0.0
    %v2018 = vadd.f32 %v2016, %v2017
    %v2019 = vsel %vm2011, %v1982, 0.0
    %v2020 = vadd.f32 %v2018, %v2019
    %v2021 = vsel %vm2011, %v1984, 0.0
    %v2022 = vadd.f32 %v2020, %v2021
    %v2023 = vsel %vm2011, %v1987, 0.0
    %v2024 = vadd.f32 %v2022, %v2023
    %v2025 = vsel %vm2011, %v1989, 0.0
    %v2026 = vadd.f32 %v2024, %v2025
    %v2027 = vsel %vm2011, %v1992, 0.0
    %v2028 = vadd.f32 %v2026, %v2027
    %v2029 = vsel %vm2011, %v1994, 0.0
    %v2030 = vadd.f32 %v2028, %v2029
    %v2031 = vsel %vm2011, %v1997, 0.0
    %v2032 = vadd.f32 %v2030, %v2031
    %v2033 = vsel %vm2011, %v1999, 0.0
    %v2034 = vadd.f32 %v2032, %v2033
    %v2035 = vsel %vm2011, %v2002, 0.0
    %v2036 = vadd.f32 %v2034, %v2035
    %v2037 = vsel %vm2011, %v2004, 0.0
    %v2038 = vadd.f32 %v2036, %v2037
    %v2039 = vsel %vm2011, %v2007, 0.0
    %v2040 = vadd.f32 %v2038, %v2039
    %v2041 = vsel %vm2011, %v2009, 0.0
    %v2042 = vadd.f32 %v2040, %v2041
    %v2043 = vrot.slane %v2042, 4
    %v2044 = vadd.f32 %v2042, %v2043
    %v2045 = vrot.slane %v2044, 2
    %v2046 = vadd.f32 %v2044, %v2045
    %v2047 = vrot.slane %v2046, 1
    %v2048 = vadd.f32 %v2046, %v2047
    %v2049 = vmul.f32 %v2048, 0.0078125
    %v2050 = vmul.f32 %v1972, %v1972
    %v2051 = vmul.f32 %v1974, %v1974
    %v2052 = vmul.f32 %v1977, %v1977
    %v2053 = vmul.f32 %v1979, %v1979
    %v2054 = vmul.f32 %v1982, %v1982
    %v2055 = vmul.f32 %v1984, %v1984
    %v2056 = vmul.f32 %v1987, %v1987
    %v2057 = vmul.f32 %v1989, %v1989
    %v2058 = vmul.f32 %v1992, %v1992
    %v2059 = vmul.f32 %v1994, %v1994
    %v2060 = vmul.f32 %v1997, %v1997
    %v2061 = vmul.f32 %v1999, %v1999
    %v2062 = vmul.f32 %v2002, %v2002
    %v2063 = vmul.f32 %v2004, %v2004
    %v2064 = vmul.f32 %v2007, %v2007
    %v2065 = vmul.f32 %v2009, %v2009
    %v2066 = vsel %vm2011, %v2050, 0.0
    %v2067 = vsel %vm2011, %v2051, 0.0
    %v2068 = vadd.f32 %v2066, %v2067
    %v2069 = vsel %vm2011, %v2052, 0.0
    %v2070 = vadd.f32 %v2068, %v2069
    %v2071 = vsel %vm2011, %v2053, 0.0
    %v2072 = vadd.f32 %v2070, %v2071
    %v2073 = vsel %vm2011, %v2054, 0.0
    %v2074 = vadd.f32 %v2072, %v2073
    %v2075 = vsel %vm2011, %v2055, 0.0
    %v2076 = vadd.f32 %v2074, %v2075
    %v2077 = vsel %vm2011, %v2056, 0.0
    %v2078 = vadd.f32 %v2076, %v2077
    %v2079 = vsel %vm2011, %v2057, 0.0
    %v2080 = vadd.f32 %v2078, %v2079
    %v2081 = vsel %vm2011, %v2058, 0.0
    %v2082 = vadd.f32 %v2080, %v2081
    %v2083 = vsel %vm2011, %v2059, 0.0
    %v2084 = vadd.f32 %v2082, %v2083
    %v2085 = vsel %vm2011, %v2060, 0.0
    %v2086 = vadd.f32 %v2084, %v2085
    %v2087 = vsel %vm2011, %v2061, 0.0
    %v2088 = vadd.f32 %v2086, %v2087
    %v2089 = vsel %vm2011, %v2062, 0.0
    %v2090 = vadd.f32 %v2088, %v2089
    %v2091 = vsel %vm2011, %v2063, 0.0
    %v2092 = vadd.f32 %v2090, %v2091
    %v2093 = vsel %vm2011, %v2064, 0.0
    %v2094 = vadd.f32 %v2092, %v2093
    %v2095 = vsel %vm2011, %v2065, 0.0
    %v2096 = vadd.f32 %v2094, %v2095
    %v2097 = vrot.slane %v2096, 4
    %v2098 = vadd.f32 %v2096, %v2097
    %v2099 = vrot.slane %v2098, 2
    %v2100 = vadd.f32 %v2098, %v2099
    %v2101 = vrot.slane %v2100, 1
    %v2102 = vadd.f32 %v2100, %v2101
    %v2103 = vmul.f32 %v2102, 0.0078125
    %v2104 = vmul.f32 %v2049, %v2049
    %v2105 = vsub.f32 %v2103, %v2104
    %v2106 = vmax.f32 %v2105, 0.0
    %v2107 = vadd.f32 %v2106, 1e-05
    %v2108 = vrsqrt.pop %v2107
    %v2109 = vmul.f32 %v2108, %v2107
    %v2110 = vmul.f32 %v2109, %v2108
    %v2111 = vmul.f32 0.5, %v2110
    %v2112 = vsub.f32 1.5, %v2111
    %v2113 = vmul.f32 %v2108, %v2112
    %vm2114 = vweird.f32 %v2107
    %vm2115 = vweird.f32 %v2108
    %vm2116 = vmor %vm2114, %vm2115
    %v2117 = vsel %vm2116, %v2108, %v2113
    %v2118 = vmul.f32 %v26, %v2117
    %v2119 = vmul.f32 %v2049, %v2118
    %v2121 = vrot.slane %v2119, 7
    %v2123 = vsub.f32 %v26, %v2121
    %v2124 = vperm.slane %v2118, 0
    %v2125 = vmul.f32 %v1972, %v2124
    %v2126 = vmul.f32 %v1974, %v2124
    %v2127 = vmul.f32 %v1977, %v2124
    %v2128 = vmul.f32 %v1979, %v2124
    %v2129 = vmul.f32 %v1982, %v2124
    %v2130 = vmul.f32 %v1984, %v2124
    %v2131 = vmul.f32 %v1987, %v2124
    %v2132 = vmul.f32 %v1989, %v2124
    %v2133 = vmul.f32 %v1992, %v2124
    %v2134 = vmul.f32 %v1994, %v2124
    %v2135 = vmul.f32 %v1997, %v2124
    %v2136 = vmul.f32 %v1999, %v2124
    %v2137 = vmul.f32 %v2002, %v2124
    %v2138 = vmul.f32 %v2004, %v2124
    %v2139 = vmul.f32 %v2007, %v2124
    %v2140 = vmul.f32 %v2009, %v2124
    %v2141 = vperm.slane %v2123, 1
    %v2142 = vadd.f32 %v2125, %v2141
    %v2143 = vadd.f32 %v2126, %v2141
    %v2144 = vadd.f32 %v2127, %v2141
    %v2145 = vadd.f32 %v2128, %v2141
    %v2146 = vadd.f32 %v2129, %v2141
    %v2147 = vadd.f32 %v2130, %v2141
    %v2148 = vadd.f32 %v2131, %v2141
    %v2149 = vadd.f32 %v2132, %v2141
    %v2150 = vadd.f32 %v2133, %v2141
    %v2151 = vadd.f32 %v2134, %v2141
    %v2152 = vadd.f32 %v2135, %v2141
    %v2153 = vadd.f32 %v2136, %v2141
    %v2154 = vadd.f32 %v2137, %v2141
    %v2155 = vadd.f32 %v2138, %v2141
    %v2156 = vadd.f32 %v2139, %v2141
    %v2157 = vadd.f32 %v2140, %v2141
    %v2158 = vmax.f32 %v2142, 0.0
    %v2159 = vmax.f32 %v2143, 0.0
    %v2160 = vmax.f32 %v2144, 0.0
    %v2161 = vmax.f32 %v2145, 0.0
    %v2162 = vmax.f32 %v2146, 0.0
    %v2163 = vmax.f32 %v2147, 0.0
    %v2164 = vmax.f32 %v2148, 0.0
    %v2165 = vmax.f32 %v2149, 0.0
    %v2166 = vmax.f32 %v2150, 0.0
    %v2167 = vmax.f32 %v2151, 0.0
    %v2168 = vmax.f32 %v2152, 0.0
    %v2169 = vmax.f32 %v2153, 0.0
    %v2170 = vmax.f32 %v2154, 0.0
    %v2171 = vmax.f32 %v2155, 0.0
    %v2172 = vmax.f32 %v2156, 0.0
    %v2173 = vmax.f32 %v2157, 0.0
    %v2174 = vpack.c.bf16 %v2159, %v2158
    %v2175 = vpack.c.bf16 %v2161, %v2160
    %v2176 = vpack.c.bf16 %v2163, %v2162
    %v2177 = vpack.c.bf16 %v2165, %v2164
    %v2178 = vpack.c.bf16 %v2167, %v2166
    %v2179 = vpack.c.bf16 %v2169, %v2168
    %v2180 = vpack.c.bf16 %v2171, %v2170
    %v2181 = vpack.c.bf16 %v2173, %v2172
    %v2182 = vld [vmem:[%s3] sm:$0xf]
    %v2183 = vld [vmem:[%s3 + $0x4] sm:$0xf]
    %v2184 = vld [vmem:[%s3 + $0x8] sm:$0xf]
    %v2185 = vld [vmem:[%s3 + $0xc] sm:$0xf]
    %v2186 = vld [vmem:[%s3 + $0x10] sm:$0xf]
    %v2187 = vld [vmem:[%s3 + $0x14] sm:$0xf]
    %v2188 = vld [vmem:[%s3 + $0x18] sm:$0xf]
    %v2189 = vld [vmem:[%s3 + $0x1c] sm:$0xf]
    %v2198 = vunpack.c.l.b16 %v2182
    %v2199 = vunpack.c.l.b16 %v2183
    %v2200 = vunpack.c.l.b16 %v2184
    %v2201 = vunpack.c.l.b16 %v2185
    %v2202 = vunpack.c.l.b16 %v2186
    %v2203 = vunpack.c.l.b16 %v2187
    %v2204 = vunpack.c.l.b16 %v2188
    %v2205 = vunpack.c.l.b16 %v2189
    %v2206 = vpack.c.b16 %v2199, %v2198
    %v2207 = vpack.c.b16 %v2201, %v2200
    %v2208 = vpack.c.b16 %v2203, %v2202
    %v2209 = vpack.c.b16 %v2205, %v2204
    %v2215 = vsel %vm2011, %v2174, 0
    %v2218 = vsel %vm2011, %v2175, 0
    %v2221 = vsel %vm2011, %v2176, 0
    %v2224 = vsel %vm2011, %v2177, 0
    %v2227 = vsel %vm2011, %v2178, 0
    %v2230 = vsel %vm2011, %v2179, 0
    %v2233 = vsel %vm2011, %v2180, 0
    %v2236 = vsel %vm2011, %v2181, 0
    %2238 = vmatpush.bf16.msra.mxu0 0
    %2239 = vmatpush.bf16.msra.mxu0 0
    %2240 = vmatpush.bf16.msra.mxu0 0
    %2241 = vmatpush.bf16.msra.mxu0 0
    %2242 = vmatpush.bf16.msra.mxu0 %v2209
    %2243 = vmatpush.bf16.msra.mxu0 %v2208
    %2244 = vmatpush.bf16.msra.mxu0 %v2207
    %2245 = vmatpush.bf16.msra.mxu0 %v2206
    %2246 = vmatmul.bf16.gmra.mxu0 %v2215
    %v2247 = vpop.f32.mrf.mxu0
    %v2248 = vadd.f32 0.0, %v2247
    %v2249 = vpop.f32.mrf.mxu0
    %v2250 = vadd.f32 0.0, %v2249
    %2251 = vmatmul.bf16.gmra.mxu0 %v2218
    %v2252 = vpop.f32.mrf.mxu0
    %v2253 = vadd.f32 0.0, %v2252
    %v2254 = vpop.f32.mrf.mxu0
    %v2255 = vadd.f32 0.0, %v2254
    %2256 = vmatmul.bf16.gmra.mxu0 %v2221
    %v2257 = vpop.f32.mrf.mxu0
    %v2258 = vadd.f32 0.0, %v2257
    %v2259 = vpop.f32.mrf.mxu0
    %v2260 = vadd.f32 0.0, %v2259
    %2261 = vmatmul.bf16.gmra.mxu0 %v2224
    %v2262 = vpop.f32.mrf.mxu0
    %v2263 = vadd.f32 0.0, %v2262
    %v2264 = vpop.f32.mrf.mxu0
    %v2265 = vadd.f32 0.0, %v2264
    %2266 = vmatmul.bf16.gmra.mxu0 %v2227
    %v2267 = vpop.f32.mrf.mxu0
    %v2268 = vadd.f32 0.0, %v2267
    %v2269 = vpop.f32.mrf.mxu0
    %v2270 = vadd.f32 0.0, %v2269
    %2271 = vmatmul.bf16.gmra.mxu0 %v2230
    %v2272 = vpop.f32.mrf.mxu0
    %v2273 = vadd.f32 0.0, %v2272
    %v2274 = vpop.f32.mrf.mxu0
    %v2275 = vadd.f32 0.0, %v2274
    %2276 = vmatmul.bf16.gmra.mxu0 %v2233
    %v2277 = vpop.f32.mrf.mxu0
    %v2278 = vadd.f32 0.0, %v2277
    %v2279 = vpop.f32.mrf.mxu0
    %v2280 = vadd.f32 0.0, %v2279
    %2281 = vmatmul.bf16.gmra.mxu0 %v2236
    %v2282 = vpop.f32.mrf.mxu0
    %v2283 = vadd.f32 0.0, %v2282
    %v2284 = vpop.f32.mrf.mxu0
    %v2285 = vadd.f32 0.0, %v2284
    %2286 = vdwg.mxu0
    %v2287 = vsel %vm2011, %v2248, 0.0
    %v2288 = vsel %vm2011, %v2250, 0.0
    %v2289 = vadd.f32 %v2287, %v2288
    %v2290 = vsel %vm2011, %v2253, 0.0
    %v2291 = vadd.f32 %v2289, %v2290
    %v2292 = vsel %vm2011, %v2255, 0.0
    %v2293 = vadd.f32 %v2291, %v2292
    %v2294 = vsel %vm2011, %v2258, 0.0
    %v2295 = vadd.f32 %v2293, %v2294
    %v2296 = vsel %vm2011, %v2260, 0.0
    %v2297 = vadd.f32 %v2295, %v2296
    %v2298 = vsel %vm2011, %v2263, 0.0
    %v2299 = vadd.f32 %v2297, %v2298
    %v2300 = vsel %vm2011, %v2265, 0.0
    %v2301 = vadd.f32 %v2299, %v2300
    %v2302 = vsel %vm2011, %v2268, 0.0
    %v2303 = vadd.f32 %v2301, %v2302
    %v2304 = vsel %vm2011, %v2270, 0.0
    %v2305 = vadd.f32 %v2303, %v2304
    %v2306 = vsel %vm2011, %v2273, 0.0
    %v2307 = vadd.f32 %v2305, %v2306
    %v2308 = vsel %vm2011, %v2275, 0.0
    %v2309 = vadd.f32 %v2307, %v2308
    %v2310 = vsel %vm2011, %v2278, 0.0
    %v2311 = vadd.f32 %v2309, %v2310
    %v2312 = vsel %vm2011, %v2280, 0.0
    %v2313 = vadd.f32 %v2311, %v2312
    %v2314 = vsel %vm2011, %v2283, 0.0
    %v2315 = vadd.f32 %v2313, %v2314
    %v2316 = vsel %vm2011, %v2285, 0.0
    %v2317 = vadd.f32 %v2315, %v2316
    %v2318 = vrot.slane %v2317, 4
    %v2319 = vadd.f32 %v2317, %v2318
    %v2320 = vrot.slane %v2319, 2
    %v2321 = vadd.f32 %v2319, %v2320
    %v2322 = vrot.slane %v2321, 1
    %v2323 = vadd.f32 %v2321, %v2322
    %v2324 = vmul.f32 %v2323, 0.0078125
    %v2325 = vmul.f32 %v2248, %v2248
    %v2326 = vmul.f32 %v2250, %v2250
    %v2327 = vmul.f32 %v2253, %v2253
    %v2328 = vmul.f32 %v2255, %v2255
    %v2329 = vmul.f32 %v2258, %v2258
    %v2330 = vmul.f32 %v2260, %v2260
    %v2331 = vmul.f32 %v2263, %v2263
    %v2332 = vmul.f32 %v2265, %v2265
    %v2333 = vmul.f32 %v2268, %v2268
    %v2334 = vmul.f32 %v2270, %v2270
    %v2335 = vmul.f32 %v2273, %v2273
    %v2336 = vmul.f32 %v2275, %v2275
    %v2337 = vmul.f32 %v2278, %v2278
    %v2338 = vmul.f32 %v2280, %v2280
    %v2339 = vmul.f32 %v2283, %v2283
    %v2340 = vmul.f32 %v2285, %v2285
    %v2341 = vsel %vm2011, %v2325, 0.0
    %v2342 = vsel %vm2011, %v2326, 0.0
    %v2343 = vadd.f32 %v2341, %v2342
    %v2344 = vsel %vm2011, %v2327, 0.0
    %v2345 = vadd.f32 %v2343, %v2344
    %v2346 = vsel %vm2011, %v2328, 0.0
    %v2347 = vadd.f32 %v2345, %v2346
    %v2348 = vsel %vm2011, %v2329, 0.0
    %v2349 = vadd.f32 %v2347, %v2348
    %v2350 = vsel %vm2011, %v2330, 0.0
    %v2351 = vadd.f32 %v2349, %v2350
    %v2352 = vsel %vm2011, %v2331, 0.0
    %v2353 = vadd.f32 %v2351, %v2352
    %v2354 = vsel %vm2011, %v2332, 0.0
    %v2355 = vadd.f32 %v2353, %v2354
    %v2356 = vsel %vm2011, %v2333, 0.0
    %v2357 = vadd.f32 %v2355, %v2356
    %v2358 = vsel %vm2011, %v2334, 0.0
    %v2359 = vadd.f32 %v2357, %v2358
    %v2360 = vsel %vm2011, %v2335, 0.0
    %v2361 = vadd.f32 %v2359, %v2360
    %v2362 = vsel %vm2011, %v2336, 0.0
    %v2363 = vadd.f32 %v2361, %v2362
    %v2364 = vsel %vm2011, %v2337, 0.0
    %v2365 = vadd.f32 %v2363, %v2364
    %v2366 = vsel %vm2011, %v2338, 0.0
    %v2367 = vadd.f32 %v2365, %v2366
    %v2368 = vsel %vm2011, %v2339, 0.0
    %v2369 = vadd.f32 %v2367, %v2368
    %v2370 = vsel %vm2011, %v2340, 0.0
    %v2371 = vadd.f32 %v2369, %v2370
    %v2372 = vrot.slane %v2371, 4
    %v2373 = vadd.f32 %v2371, %v2372
    %v2374 = vrot.slane %v2373, 2
    %v2375 = vadd.f32 %v2373, %v2374
    %v2376 = vrot.slane %v2375, 1
    %v2377 = vadd.f32 %v2375, %v2376
    %v2378 = vmul.f32 %v2377, 0.0078125
    %v2379 = vmul.f32 %v2324, %v2324
    %v2380 = vsub.f32 %v2378, %v2379
    %v2381 = vmax.f32 %v2380, 0.0
    %v2382 = vadd.f32 %v2381, 1e-05
    %v2383 = vrsqrt.pop %v2382
    %v2384 = vmul.f32 %v2383, %v2382
    %v2385 = vmul.f32 %v2384, %v2383
    %v2386 = vmul.f32 0.5, %v2385
    %v2387 = vsub.f32 1.5, %v2386
    %v2388 = vmul.f32 %v2383, %v2387
    %vm2389 = vweird.f32 %v2382
    %vm2390 = vweird.f32 %v2383
    %vm2391 = vmor %vm2389, %vm2390
    %v2392 = vsel %vm2391, %v2383, %v2388
    %v2394 = vrot.slane %v26, 4
    %v2396 = vmul.f32 %v2394, %v2392
    %v2397 = vmul.f32 %v2324, %v2396
    %v2399 = vrot.slane %v2397, 7
    %v2401 = vsub.f32 %v2394, %v2399
    %v2402 = vperm.slane %v2396, 0
    %v2403 = vmul.f32 %v2248, %v2402
    %v2404 = vmul.f32 %v2250, %v2402
    %v2405 = vmul.f32 %v2253, %v2402
    %v2406 = vmul.f32 %v2255, %v2402
    %v2407 = vmul.f32 %v2258, %v2402
    %v2408 = vmul.f32 %v2260, %v2402
    %v2409 = vmul.f32 %v2263, %v2402
    %v2410 = vmul.f32 %v2265, %v2402
    %v2411 = vmul.f32 %v2268, %v2402
    %v2412 = vmul.f32 %v2270, %v2402
    %v2413 = vmul.f32 %v2273, %v2402
    %v2414 = vmul.f32 %v2275, %v2402
    %v2415 = vmul.f32 %v2278, %v2402
    %v2416 = vmul.f32 %v2280, %v2402
    %v2417 = vmul.f32 %v2283, %v2402
    %v2418 = vmul.f32 %v2285, %v2402
    %v2419 = vperm.slane %v2401, 1
    %v2420 = vadd.f32 %v2403, %v2419
    %v2421 = vadd.f32 %v2404, %v2419
    %v2422 = vadd.f32 %v2405, %v2419
    %v2423 = vadd.f32 %v2406, %v2419
    %v2424 = vadd.f32 %v2407, %v2419
    %v2425 = vadd.f32 %v2408, %v2419
    %v2426 = vadd.f32 %v2409, %v2419
    %v2427 = vadd.f32 %v2410, %v2419
    %v2428 = vadd.f32 %v2411, %v2419
    %v2429 = vadd.f32 %v2412, %v2419
    %v2430 = vadd.f32 %v2413, %v2419
    %v2431 = vadd.f32 %v2414, %v2419
    %v2432 = vadd.f32 %v2415, %v2419
    %v2433 = vadd.f32 %v2416, %v2419
    %v2434 = vadd.f32 %v2417, %v2419
    %v2435 = vadd.f32 %v2418, %v2419
    %v2436 = vmax.f32 %v2420, 0.0
    %v2437 = vmax.f32 %v2421, 0.0
    %v2438 = vmax.f32 %v2422, 0.0
    %v2439 = vmax.f32 %v2423, 0.0
    %v2440 = vmax.f32 %v2424, 0.0
    %v2441 = vmax.f32 %v2425, 0.0
    %v2442 = vmax.f32 %v2426, 0.0
    %v2443 = vmax.f32 %v2427, 0.0
    %v2444 = vmax.f32 %v2428, 0.0
    %v2445 = vmax.f32 %v2429, 0.0
    %v2446 = vmax.f32 %v2430, 0.0
    %v2447 = vmax.f32 %v2431, 0.0
    %v2448 = vmax.f32 %v2432, 0.0
    %v2449 = vmax.f32 %v2433, 0.0
    %v2450 = vmax.f32 %v2434, 0.0
    %v2451 = vmax.f32 %v2435, 0.0
    %v2452 = vpack.c.bf16 %v2437, %v2436
    %v2453 = vpack.c.bf16 %v2439, %v2438
    %v2454 = vpack.c.bf16 %v2441, %v2440
    %v2455 = vpack.c.bf16 %v2443, %v2442
    %v2456 = vpack.c.bf16 %v2445, %v2444
    %v2457 = vpack.c.bf16 %v2447, %v2446
    %v2458 = vpack.c.bf16 %v2449, %v2448
    %v2459 = vpack.c.bf16 %v2451, %v2450
    %v2460 = vld [vmem:[%s4] sm:$0xf]
    %v2461 = vld [vmem:[%s4 + $0x4] sm:$0xf]
    %v2462 = vld [vmem:[%s4 + $0x8] sm:$0xf]
    %v2463 = vld [vmem:[%s4 + $0xc] sm:$0xf]
    %v2464 = vld [vmem:[%s4 + $0x10] sm:$0xf]
    %v2465 = vld [vmem:[%s4 + $0x14] sm:$0xf]
    %v2466 = vld [vmem:[%s4 + $0x18] sm:$0xf]
    %v2467 = vld [vmem:[%s4 + $0x1c] sm:$0xf]
    %v2476 = vunpack.c.l.b16 %v2460
    %v2477 = vunpack.c.l.b16 %v2461
    %v2478 = vunpack.c.l.b16 %v2462
    %v2479 = vunpack.c.l.b16 %v2463
    %v2480 = vunpack.c.l.b16 %v2464
    %v2481 = vunpack.c.l.b16 %v2465
    %v2482 = vunpack.c.l.b16 %v2466
    %v2483 = vunpack.c.l.b16 %v2467
    %v2484 = vpack.c.b16 %v2477, %v2476
    %v2485 = vpack.c.b16 %v2479, %v2478
    %v2486 = vpack.c.b16 %v2481, %v2480
    %v2487 = vpack.c.b16 %v2483, %v2482
    %v2493 = vsel %vm2011, %v2452, 0
    %v2496 = vsel %vm2011, %v2453, 0
    %v2499 = vsel %vm2011, %v2454, 0
    %v2502 = vsel %vm2011, %v2455, 0
    %v2505 = vsel %vm2011, %v2456, 0
    %v2508 = vsel %vm2011, %v2457, 0
    %v2511 = vsel %vm2011, %v2458, 0
    %v2514 = vsel %vm2011, %v2459, 0
    %2516 = vmatpush.bf16.msra.mxu0 0
    %2517 = vmatpush.bf16.msra.mxu0 0
    %2518 = vmatpush.bf16.msra.mxu0 0
    %2519 = vmatpush.bf16.msra.mxu0 0
    %2520 = vmatpush.bf16.msra.mxu0 %v2487
    %2521 = vmatpush.bf16.msra.mxu0 %v2486
    %2522 = vmatpush.bf16.msra.mxu0 %v2485
    %2523 = vmatpush.bf16.msra.mxu0 %v2484
    %2524 = vmatmul.bf16.gmra.mxu0 %v2493
    %v2525 = vpop.f32.mrf.mxu0
    %v2526 = vadd.f32 0.0, %v2525
    %v2527 = vpop.f32.mrf.mxu0
    %v2528 = vadd.f32 0.0, %v2527
    %2529 = vmatmul.bf16.gmra.mxu0 %v2496
    %v2530 = vpop.f32.mrf.mxu0
    %v2531 = vadd.f32 0.0, %v2530
    %v2532 = vpop.f32.mrf.mxu0
    %v2533 = vadd.f32 0.0, %v2532
    %2534 = vmatmul.bf16.gmra.mxu0 %v2499
    %v2535 = vpop.f32.mrf.mxu0
    %v2536 = vadd.f32 0.0, %v2535
    %v2537 = vpop.f32.mrf.mxu0
    %v2538 = vadd.f32 0.0, %v2537
    %2539 = vmatmul.bf16.gmra.mxu0 %v2502
    %v2540 = vpop.f32.mrf.mxu0
    %v2541 = vadd.f32 0.0, %v2540
    %v2542 = vpop.f32.mrf.mxu0
    %v2543 = vadd.f32 0.0, %v2542
    %2544 = vmatmul.bf16.gmra.mxu0 %v2505
    %v2545 = vpop.f32.mrf.mxu0
    %v2546 = vadd.f32 0.0, %v2545
    %v2547 = vpop.f32.mrf.mxu0
    %v2548 = vadd.f32 0.0, %v2547
    %2549 = vmatmul.bf16.gmra.mxu0 %v2508
    %v2550 = vpop.f32.mrf.mxu0
    %v2551 = vadd.f32 0.0, %v2550
    %v2552 = vpop.f32.mrf.mxu0
    %v2553 = vadd.f32 0.0, %v2552
    %2554 = vmatmul.bf16.gmra.mxu0 %v2511
    %v2555 = vpop.f32.mrf.mxu0
    %v2556 = vadd.f32 0.0, %v2555
    %v2557 = vpop.f32.mrf.mxu0
    %v2558 = vadd.f32 0.0, %v2557
    %2559 = vmatmul.bf16.gmra.mxu0 %v2514
    %v2560 = vpop.f32.mrf.mxu0
    %v2561 = vadd.f32 0.0, %v2560
    %v2562 = vpop.f32.mrf.mxu0
    %v2563 = vadd.f32 0.0, %v2562
    %2564 = vdwg.mxu0
    %v2565 = vlaneseq
    %v2566 = vand.u32 %v2565, 127
    %vm2567 = vcmp.lt.s32.totalorder %v2566, 64
    %v2568 = vsel %vm2567, %v2526, %v2248
    %v2569 = vsel %vm2567, %v2528, %v2250
    %v2570 = vsel %vm2567, %v2531, %v2253
    %v2571 = vsel %vm2567, %v2533, %v2255
    %v2572 = vsel %vm2567, %v2536, %v2258
    %v2573 = vsel %vm2567, %v2538, %v2260
    %v2574 = vsel %vm2567, %v2541, %v2263
    %v2575 = vsel %vm2567, %v2543, %v2265
    %v2576 = vsel %vm2567, %v2546, %v2268
    %v2577 = vsel %vm2567, %v2548, %v2270
    %v2578 = vsel %vm2567, %v2551, %v2273
    %v2579 = vsel %vm2567, %v2553, %v2275
    %v2580 = vsel %vm2567, %v2556, %v2278
    %v2581 = vsel %vm2567, %v2558, %v2280
    %v2582 = vsel %vm2567, %v2561, %v2283
    %v2583 = vsel %vm2567, %v2563, %v2285
    %v2584 = vperm.slane %v27, 0
    %v2585 = vadd.f32 %v2568, %v2584
    %v2586 = vadd.f32 %v2569, %v2584
    %v2587 = vadd.f32 %v2570, %v2584
    %v2588 = vadd.f32 %v2571, %v2584
    %v2589 = vadd.f32 %v2572, %v2584
    %v2590 = vadd.f32 %v2573, %v2584
    %v2591 = vadd.f32 %v2574, %v2584
    %v2592 = vadd.f32 %v2575, %v2584
    %v2593 = vadd.f32 %v2576, %v2584
    %v2594 = vadd.f32 %v2577, %v2584
    %v2595 = vadd.f32 %v2578, %v2584
    %v2596 = vadd.f32 %v2579, %v2584
    %v2597 = vadd.f32 %v2580, %v2584
    %v2598 = vadd.f32 %v2581, %v2584
    %v2599 = vadd.f32 %v2582, %v2584
    %v2600 = vadd.f32 %v2583, %v2584
    %2601 = vst [vmem:[#allocation2] sm:$0xff] %v2585
    %2602 = vst [vmem:[#allocation2 + $0x8] sm:$0xff] %v2586
    %2603 = vst [vmem:[#allocation2 + $0x10] sm:$0xff] %v2587
    %2604 = vst [vmem:[#allocation2 + $0x18] sm:$0xff] %v2588
    %2605 = vst [vmem:[#allocation2 + $0x20] sm:$0xff] %v2589
    %2606 = vst [vmem:[#allocation2 + $0x28] sm:$0xff] %v2590
    %2607 = vst [vmem:[#allocation2 + $0x30] sm:$0xff] %v2591
    %2608 = vst [vmem:[#allocation2 + $0x38] sm:$0xff] %v2592
    %2609 = vst [vmem:[#allocation2 + $0x40] sm:$0xff] %v2593
    %2610 = vst [vmem:[#allocation2 + $0x48] sm:$0xff] %v2594
    %2611 = vst [vmem:[#allocation2 + $0x50] sm:$0xff] %v2595
    %2612 = vst [vmem:[#allocation2 + $0x58] sm:$0xff] %v2596
    %2613 = vst [vmem:[#allocation2 + $0x60] sm:$0xff] %v2597
    %2614 = vst [vmem:[#allocation2 + $0x68] sm:$0xff] %v2598
    %2615 = vst [vmem:[#allocation2 + $0x70] sm:$0xff] %v2599
    %2616 = vst [vmem:[#allocation2 + $0x78] sm:$0xff] %v2600
    // Predicated region
    $region26: #{tpu_custom_call.1} parent=1 // pred_check
      _
    $region27: #{tpu_custom_call.1} parent=1 // pred_check_branch
      %2618 = sbr.rel (0) target = $region29
    $region28: #{tpu_custom_call.1} parent=1 // pred_region
      %2620 = vsyncadd [#allocation3], 0
      %s2621 = sshll.u32 [#allocation2], 4
      %s2622 = int_to_ptr.vmem [resolvable:$true] %s2621
      %s2623 = sshll.u32 %s6, 4
      %s2624 = int_to_ptr.hbm [resolvable:$true] %s2623
      %2629 = dma.vmem_to_hbm [thread:$0]  %s2622, 2048, %s2624, [#allocation3], 128, 128, 8
    $region29: #{tpu_custom_call.1} parent=1 // pred_fallthru
      _
    // Predicated region
    $region30: #{tpu_custom_call.1} parent=1 // pred_check
      _
    $region31: #{tpu_custom_call.1} parent=1 // pred_check_branch
      %2631 = sbr.rel (0) target = $region33
    $region32: #{tpu_custom_call.1} parent=1 // pred_region
      %2633 = dma.done [#allocation3], 2048
    $region33: #{tpu_custom_call.1} parent=1 // pred_fallthru
      _
    %2634 = vsyncpa [#allocation3], 1

</llo_original>
